<compile_context>
chip_gen: v7x
topology: tpu7x:2x2x1
jax: 0.10.0
libtpu: 0.0.40
codegen_flags: <defaults>
</compile_context>

<pallas_src>
import functools
import math

import jax
import jax.numpy as jnp
from jax.experimental import pallas as pl
from jax.experimental.pallas import tpu as pltpu


def _attention_kernel(q_ref, k_ref, v_ref,
                      wqkv_ref, bqkv_ref, wo_h_ref, bo_ref,
                      out_ref, *maybe_attn,
                      num_heads, head_dim, with_attn):
    attn_ref = maybe_attn[0] if with_attn else None

    Bt, S, E = q_ref.shape
    M = Bt * S
    H, Dh = num_heads, head_dim

    # Flatten the batch block and cast activations to bf16 once (MXU feeds).
    qf = q_ref[...].reshape(M, E).astype(jnp.bfloat16)
    kf = k_ref[...].reshape(M, E).astype(jnp.bfloat16)
    vf = v_ref[...].reshape(M, E).astype(jnp.bfloat16)

    # Projections: bf16 x bf16 -> f32 accumulate.  Weights are pre-transposed
    # (and the query weight/bias pre-scaled by 1/sqrt(Dh)) in the wrapper.
    Q = jnp.dot(qf, wqkv_ref[0], preferred_element_type=jnp.float32) + bqkv_ref[0]
    K = jnp.dot(kf, wqkv_ref[1], preferred_element_type=jnp.float32) + bqkv_ref[1]
    V = jnp.dot(vf, wqkv_ref[2], preferred_element_type=jnp.float32) + bqkv_ref[2]

    # Single bf16 copy of the projected activations (halves live bytes).
    Q3 = Q.astype(jnp.bfloat16).reshape(Bt, S, E)
    K3 = K.astype(jnp.bfloat16).reshape(Bt, S, E)
    V3 = V.astype(jnp.bfloat16).reshape(Bt, S, E)

    # Accumulate directly into the f32 output block: init with the output
    # projection bias, then add each head's fused (P @ V_h) @ Wo_h contribution.
    # No concat scratch, no masked sub-128-lane stores.
    out_ref[...] = jnp.broadcast_to(bo_ref[...], (Bt, S, E))

    for h in range(H):                       # static loop over heads only
        lo = h * Dh
        hi = lo + Dh
        Qh = Q3[:, :, lo:hi]                 # (Bt, S, Dh) bf16
        Kh = K3[:, :, lo:hi]
        Vh = V3[:, :, lo:hi]

        # Q_h @ K_h^T, batched over the batch block, no XLU transpose.
        energy = jnp.einsum('bqd,bkd->bqk', Qh, Kh,
                            preferred_element_type=jnp.float32)   # (Bt, S, S)

        # Numerically-stable softmax, f32 throughout.
        m = jnp.max(energy, axis=-1, keepdims=True)
        e = jnp.exp(energy - m)
        denom = jnp.sum(e, axis=-1, keepdims=True)
        # Exact reciprocal when probabilities are returned to the caller
        # (rows sum to 1); approximate EUP reciprocal on the fast path.
        inv = pl.reciprocal(denom, approx=not with_attn)
        p = e * inv                          # (Bt, S, S) f32

        if with_attn:
            # Dropout is identity in eval mode.
            attn_ref[:, h:h + 1] = p.reshape(Bt, 1, S, S)

        pv = jnp.einsum('bqk,bkd->bqd', p.astype(jnp.bfloat16), Vh,
                        preferred_element_type=jnp.float32)       # (Bt, S, Dh)

        # Fused output projection for this head: (M, Dh) @ (Dh, E).
        contrib = jnp.dot(pv.reshape(M, Dh).astype(jnp.bfloat16), wo_h_ref[h],
                          preferred_element_type=jnp.float32)
        out_ref[...] += contrib.reshape(Bt, S, E)


def _pick_batch_block(B, S, *, min_steps=4, max_rows=512):
    """Largest divisor Bt of B keeping >= min_steps grid steps (pipelining and
    v7x's two TensorCores) while capping Bt*S rows per step for VMEM."""
    best = 1
    for d in range(1, B + 1):
        if B % d == 0 and (B // d) >= min_steps and d * S <= max_rows:
            best = d
    return best


def _default_vmem_limit_bytes():
    # ~75% of physical VMEM: v5e/v6e (128 MiB) -> 96 MiB, v7x (64 MiB) -> 48 MiB.
    try:
        cap = pltpu.get_tpu_info().vmem_capacity_bytes
    except Exception:
        cap = 64 * 1024 * 1024
    return min(int(cap) * 3 // 4, 100 * 1024 * 1024)


def temporal_attention(query, key, value, params, *, num_heads, return_attention=True):
    """query/key/value: (B, S, E) float32.

    Returns (out (B, S, E) f32, attn (B, H, S, S) f32 or None).
    """
    B, S, E = query.shape
    head_dim = E // num_heads
    assert head_dim * num_heads == E, "embedding_dim must be divisible by num_heads"
    inv_scale = 1.0 / math.sqrt(float(head_dim))

    # One-time layout plumbing (wrapper side, not per grid step):
    #  * pre-transpose weights (nn.Linear is y = x @ W.T + b),
    #  * fold the 1/sqrt(Dh) scale into the query projection,
    #  * cast matmul weights to bf16 (halves weight DMA + VMEM),
    #  * split Wo^T into per-head (Dh, E) slabs for the fused output projection.
    wqkv_t = jnp.stack(
        [params["wq"].T * inv_scale, params["wk"].T, params["wv"].T],
        axis=0).astype(jnp.bfloat16)                                  # (3, E, E) bf16
    bqkv = jnp.stack(
        [params["bq"] * inv_scale, params["bk"], params["bv"]], axis=0)  # (3, 1, E) f32
    wo_h = params["wo"].T.reshape(num_heads, head_dim, E).astype(jnp.bfloat16)  # (H, Dh, E)
    bo = params["bo"]                                                 # (1, E) f32

    Bt = _pick_batch_block(B, S)
    assert B % Bt == 0, "batch block must divide the batch size"
    grid = (B // Bt,)

    kernel = functools.partial(
        _attention_kernel,
        num_heads=num_heads, head_dim=head_dim, with_attn=return_attention,
    )

    seq_spec = pl.BlockSpec((Bt, S, E), lambda b: (b, 0, 0))

    in_specs = [
        seq_spec, seq_spec, seq_spec,                                 # q, k, v
        pl.BlockSpec((3, E, E), lambda b: (0, 0, 0)),                 # packed Wq/Wk/Wv (pre-T, bf16)
        pl.BlockSpec((3, 1, E), lambda b: (0, 0, 0)),                 # packed biases (f32)
        pl.BlockSpec((num_heads, head_dim, E), lambda b: (0, 0, 0)),  # Wo per head (pre-T, bf16)
        pl.BlockSpec((1, E), lambda b: (0, 0)),                       # bo (f32)
    ]

    out_shapes = [jax.ShapeDtypeStruct((B, S, E), jnp.float32)]
    out_specs = [pl.BlockSpec((Bt, S, E), lambda b: (b, 0, 0))]
    if return_attention:
        out_shapes.append(jax.ShapeDtypeStruct((B, num_heads, S, S), jnp.float32))
        out_specs.append(pl.BlockSpec((Bt, num_heads, S, S), lambda b: (b, 0, 0, 0)))

    result = pl.pallas_call(
        kernel,
        out_shape=tuple(out_shapes),
        grid_spec=pltpu.PrefetchScalarGridSpec(
            num_scalar_prefetch=0,
            grid=grid,
            in_specs=in_specs,
            out_specs=out_specs,
        ),
        compiler_params=pltpu.CompilerParams(
            dimension_semantics=("parallel",),
            vmem_limit_bytes=_default_vmem_limit_bytes(),
        ),
    )(query, key, value, wqkv_t, bqkv, wo_h, bo)

    if return_attention:
        return result[0], result[1]
    return result[0], None


def init_params(key, embedding_dim):
    """Deterministic parameter init (nn.Linear-like uniform bound)."""
    E = embedding_dim
    bound = 1.0 / math.sqrt(E)
    keys = jax.random.split(key, 8)

    def u(k, shape):
        return jax.random.uniform(k, shape, jnp.float32, -bound, bound)

    return {
        "wq": u(keys[0], (E, E)), "bq": u(keys[1], (1, E)),
        "wk": u(keys[2], (E, E)), "bk": u(keys[3], (1, E)),
        "wv": u(keys[4], (E, E)), "bv": u(keys[5], (1, E)),
        "wo": u(keys[6], (E, E)), "bo": u(keys[7], (1, E)),
    }


def _reference(query, key, value, params, num_heads):
    """Pure-JAX (f32) reference mirroring the PyTorch forward (eval mode)."""
    B, S, E = query.shape
    Dh = E // num_heads
    scale = math.sqrt(float(Dh))

    def lin(x, w, b):
        return x @ w.T + b[0]

    Q = lin(query, params["wq"], params["bq"]).reshape(B, S, num_heads, Dh).transpose(0, 2, 1, 3)
    K = lin(key, params["wk"], params["bk"]).reshape(B, S, num_heads, Dh).transpose(0, 2, 1, 3)
    V = lin(value, params["wv"], params["bv"]).reshape(B, S, num_heads, Dh).transpose(0, 2, 1, 3)
    energy = jnp.einsum("bhqd,bhkd->bhqk", Q, K) / scale
    attn = jax.nn.softmax(energy, axis=-1)
    x = jnp.einsum("bhqk,bhkd->bhqd", attn, V)
    x = x.transpose(0, 2, 1, 3).reshape(B, S, E)
    out = lin(x, params["wo"], params["bo"])
    return out, attn


if __name__ == "__main__":
    B, S, E, H = 2, 8, 32, 4

    root = jax.random.PRNGKey(0)
    k_q, k_k, k_v, k_p = jax.random.split(root, 4)
    query = jax.random.normal(k_q, (B, S, E), jnp.float32)
    key_in = jax.random.normal(k_k, (B, S, E), jnp.float32)
    value = jax.random.normal(k_v, (B, S, E), jnp.float32)
    params = init_params(k_p, E)

    # Default path: matches the module (returns attention probabilities too).
    out, attn = temporal_attention(query, key_in, value, params, num_heads=H)
    jax.block_until_ready((out, attn))

    # Optional fast path: skip materializing the (B, H, S, S) attention output.
    out_fast, _ = temporal_attention(query, key_in, value, params,
                                     num_heads=H, return_attention=False)
    jax.block_until_ready(out_fast)

    ref_out, ref_attn = _reference(query, key_in, value, params, H)
    assert out.shape == (B, S, E) and attn.shape == (B, H, S, S)
    # Tolerances account for bf16 MXU feeds everywhere (f32 accumulation,
    # f32 softmax).
    assert jnp.allclose(out, ref_out, atol=3e-2, rtol=3e-2)
    assert jnp.allclose(out_fast, ref_out, atol=3e-2, rtol=3e-2)
    assert jnp.allclose(attn, ref_attn, atol=2e-2, rtol=2e-2)

    print("KERNEL_OK")
</pallas_src>

<mosaic_0001>
module attributes {stable_mosaic.version = 11 : i64} {
  func.func @_attention_kernel(%arg0: i32, %arg1: memref<1x8x32xf32, #tpu.memory_space<vmem>>, %arg2: memref<1x8x32xf32, #tpu.memory_space<vmem>>, %arg3: memref<1x8x32xf32, #tpu.memory_space<vmem>>, %arg4: memref<3x32x32xbf16, #tpu.memory_space<vmem>>, %arg5: memref<3x1x32xf32, #tpu.memory_space<vmem>>, %arg6: memref<4x8x32xbf16, #tpu.memory_space<vmem>>, %arg7: memref<1x32xf32, #tpu.memory_space<vmem>>, %arg8: memref<1x8x32xf32, #tpu.memory_space<vmem>>, %arg9: memref<1x4x8x8xf32, #tpu.memory_space<vmem>>) attributes {dimension_semantics = [#tpu.dimension_semantics<parallel>], iteration_bounds = array<i64: 2>, scalar_prefetch = 0 : i64, scratch_operands = 0 : i64, tpu.core_type = #tpu.core_type<tc>, window_params = [{transform_indices = @transform_0, window_bounds = array<i64: 1, 8, 32>}, {transform_indices = @transform_1, window_bounds = array<i64: 1, 8, 32>}, {transform_indices = @transform_2, window_bounds = array<i64: 1, 8, 32>}, {pipeline_mode = #tpu.pipeline_mode<synchronous>, transform_indices = @transform_3, window_bounds = array<i64: 3, 32, 32>}, {pipeline_mode = #tpu.pipeline_mode<synchronous>, transform_indices = @transform_4, window_bounds = array<i64: 3, 1, 32>}, {pipeline_mode = #tpu.pipeline_mode<synchronous>, transform_indices = @transform_5, window_bounds = array<i64: 4, 8, 32>}, {pipeline_mode = #tpu.pipeline_mode<synchronous>, transform_indices = @transform_6, window_bounds = array<i64: 1, 32>}, {transform_indices = @transform_7, window_bounds = array<i64: 1, 8, 32>}, {transform_indices = @transform_8, window_bounds = array<i64: 1, 4, 8, 8>}]} {
    %c0 = arith.constant 0 : index
    %c0_0 = arith.constant 0 : index
    %c0_1 = arith.constant 0 : index
    %0 = vector.load %arg1[%c0, %c0_0, %c0_1] : memref<1x8x32xf32, #tpu.memory_space<vmem>>, vector<1x8x32xf32>
    %1 = vector.shape_cast %0 : vector<1x8x32xf32> to vector<8x32xf32>
    %2 = arith.truncf %1 : vector<8x32xf32> to vector<8x32xbf16>
    %c0_2 = arith.constant 0 : index
    %c0_3 = arith.constant 0 : index
    %c0_4 = arith.constant 0 : index
    %3 = vector.load %arg2[%c0_2, %c0_3, %c0_4] : memref<1x8x32xf32, #tpu.memory_space<vmem>>, vector<1x8x32xf32>
    %4 = vector.shape_cast %3 : vector<1x8x32xf32> to vector<8x32xf32>
    %5 = arith.truncf %4 : vector<8x32xf32> to vector<8x32xbf16>
    %c0_5 = arith.constant 0 : index
    %c0_6 = arith.constant 0 : index
    %c0_7 = arith.constant 0 : index
    %6 = vector.load %arg3[%c0_5, %c0_6, %c0_7] : memref<1x8x32xf32, #tpu.memory_space<vmem>>, vector<1x8x32xf32>
    %7 = vector.shape_cast %6 : vector<1x8x32xf32> to vector<8x32xf32>
    %8 = arith.truncf %7 : vector<8x32xf32> to vector<8x32xbf16>
    %c0_8 = arith.constant 0 : index
    %c0_9 = arith.constant 0 : index
    %c0_10 = arith.constant 0 : index
    %9 = vector.load %arg4[%c0_8, %c0_9, %c0_10] : memref<3x32x32xbf16, #tpu.memory_space<vmem>>, vector<1x32x32xbf16>
    %10 = vector.shape_cast %9 : vector<1x32x32xbf16> to vector<32x32xbf16>
    %cst = arith.constant dense<0.000000e+00> : vector<8x32xf32>
    %11 = tpu.matmul %2, %10, %cst {dimension_numbers = #tpu.dot_dimension_numbers<[1], [0], [0], [1], [0, 0, 1, 1], [], []>} : vector<8x32xbf16>, vector<32x32xbf16>, vector<8x32xf32> -> vector<8x32xf32>
    %c0_11 = arith.constant 0 : index
    %c0_12 = arith.constant 0 : index
    %c0_13 = arith.constant 0 : index
    %12 = vector.load %arg5[%c0_11, %c0_12, %c0_13] : memref<3x1x32xf32, #tpu.memory_space<vmem>>, vector<1x1x32xf32>
    %13 = vector.shape_cast %12 : vector<1x1x32xf32> to vector<1x32xf32>
    %14 = vector.broadcast %13 : vector<1x32xf32> to vector<8x32xf32>
    %15 = arith.addf %11, %14 : vector<8x32xf32>
    %c1 = arith.constant 1 : index
    %c0_14 = arith.constant 0 : index
    %c0_15 = arith.constant 0 : index
    %16 = vector.load %arg4[%c1, %c0_14, %c0_15] : memref<3x32x32xbf16, #tpu.memory_space<vmem>>, vector<1x32x32xbf16>
    %17 = vector.shape_cast %16 : vector<1x32x32xbf16> to vector<32x32xbf16>
    %cst_16 = arith.constant dense<0.000000e+00> : vector<8x32xf32>
    %18 = tpu.matmul %5, %17, %cst_16 {dimension_numbers = #tpu.dot_dimension_numbers<[1], [0], [0], [1], [0, 0, 1, 1], [], []>} : vector<8x32xbf16>, vector<32x32xbf16>, vector<8x32xf32> -> vector<8x32xf32>
    %c1_17 = arith.constant 1 : index
    %c0_18 = arith.constant 0 : index
    %c0_19 = arith.constant 0 : index
    %19 = vector.load %arg5[%c1_17, %c0_18, %c0_19] : memref<3x1x32xf32, #tpu.memory_space<vmem>>, vector<1x1x32xf32>
    %20 = vector.shape_cast %19 : vector<1x1x32xf32> to vector<1x32xf32>
    %21 = vector.broadcast %20 : vector<1x32xf32> to vector<8x32xf32>
    %22 = arith.addf %18, %21 : vector<8x32xf32>
    %c2 = arith.constant 2 : index
    %c0_20 = arith.constant 0 : index
    %c0_21 = arith.constant 0 : index
    %23 = vector.load %arg4[%c2, %c0_20, %c0_21] : memref<3x32x32xbf16, #tpu.memory_space<vmem>>, vector<1x32x32xbf16>
    %24 = vector.shape_cast %23 : vector<1x32x32xbf16> to vector<32x32xbf16>
    %cst_22 = arith.constant dense<0.000000e+00> : vector<8x32xf32>
    %25 = tpu.matmul %8, %24, %cst_22 {dimension_numbers = #tpu.dot_dimension_numbers<[1], [0], [0], [1], [0, 0, 1, 1], [], []>} : vector<8x32xbf16>, vector<32x32xbf16>, vector<8x32xf32> -> vector<8x32xf32>
    %c2_23 = arith.constant 2 : index
    %c0_24 = arith.constant 0 : index
    %c0_25 = arith.constant 0 : index
    %26 = vector.load %arg5[%c2_23, %c0_24, %c0_25] : memref<3x1x32xf32, #tpu.memory_space<vmem>>, vector<1x1x32xf32>
    %27 = vector.shape_cast %26 : vector<1x1x32xf32> to vector<1x32xf32>
    %28 = vector.broadcast %27 : vector<1x32xf32> to vector<8x32xf32>
    %29 = arith.addf %25, %28 : vector<8x32xf32>
    %30 = arith.truncf %15 : vector<8x32xf32> to vector<8x32xbf16>
    %31 = vector.shape_cast %30 : vector<8x32xbf16> to vector<1x8x32xbf16>
    %32 = arith.truncf %22 : vector<8x32xf32> to vector<8x32xbf16>
    %33 = vector.shape_cast %32 : vector<8x32xbf16> to vector<1x8x32xbf16>
    %34 = arith.truncf %29 : vector<8x32xf32> to vector<8x32xbf16>
    %35 = vector.shape_cast %34 : vector<8x32xbf16> to vector<1x8x32xbf16>
    %c0_26 = arith.constant 0 : index
    %c0_27 = arith.constant 0 : index
    %36 = vector.load %arg7[%c0_26, %c0_27] : memref<1x32xf32, #tpu.memory_space<vmem>>, vector<1x32xf32>
    %37 = vector.shape_cast %36 : vector<1x32xf32> to vector<1x1x32xf32>
    %38 = vector.broadcast %37 : vector<1x1x32xf32> to vector<1x8x32xf32>
    %c0_28 = arith.constant 0 : index
    %c0_29 = arith.constant 0 : index
    %c0_30 = arith.constant 0 : index
    %39 = vector.load %arg8[%c0_28, %c0_29, %c0_30] : memref<1x8x32xf32, #tpu.memory_space<vmem>>, vector<1x8x32xf32>
    tpu.vector_store %arg8[%c0_28, %c0_29, %c0_30], %38 {strides = array<i32>} : memref<1x8x32xf32, #tpu.memory_space<vmem>>, vector<1x8x32xf32>,
    %40 = vector.extract_strided_slice %31 {offsets = [0, 0, 0], sizes = [1, 8, 8], strides = [1, 1, 1]} : vector<1x8x32xbf16> to vector<1x8x8xbf16>
    %41 = vector.extract_strided_slice %33 {offsets = [0, 0, 0], sizes = [1, 8, 8], strides = [1, 1, 1]} : vector<1x8x32xbf16> to vector<1x8x8xbf16>
    %42 = vector.extract_strided_slice %35 {offsets = [0, 0, 0], sizes = [1, 8, 8], strides = [1, 1, 1]} : vector<1x8x32xbf16> to vector<1x8x8xbf16>
    "tpu.trace_start"() <{level = 10 : i32, message = "bqd,bkd->bqk"}> : () -> ()
    %cst_31 = arith.constant dense<0.000000e+00> : vector<1x8x8xf32>
    %43 = tpu.matmul %40, %41, %cst_31 {dimension_numbers = #tpu.dot_dimension_numbers<[2], [2], [1], [1], [0, 0, 0, 1, 1, 1], [0], [0]>} : vector<1x8x8xbf16>, vector<1x8x8xbf16>, vector<1x8x8xf32> -> vector<1x8x8xf32>
    "tpu.trace_stop"() : () -> ()
    %cst_32 = arith.constant dense<0xFF800000> : vector<1x8xf32>
    %44 = vector.multi_reduction <maximumf>, %43, %cst_32 [2] : vector<1x8x8xf32> to vector<1x8xf32>
    %45 = vector.shape_cast %44 : vector<1x8xf32> to vector<1x8x1xf32>
    %46 = vector.broadcast %45 : vector<1x8x1xf32> to vector<1x8x8xf32>
    %47 = arith.subf %43, %46 : vector<1x8x8xf32>
    %48 = math.exp %47 : vector<1x8x8xf32>
    %cst_33 = arith.constant dense<0.000000e+00> : vector<1x8xf32>
    %49 = vector.multi_reduction <add>, %48, %cst_33 [2] : vector<1x8x8xf32> to vector<1x8xf32>
    %50 = vector.shape_cast %49 : vector<1x8xf32> to vector<1x8x1xf32>
    %51 = tpu.reciprocal %50 : vector<1x8x1xf32> -> vector<1x8x1xf32>
    %52 = vector.broadcast %51 : vector<1x8x1xf32> to vector<1x8x8xf32>
    %53 = arith.mulf %48, %52 : vector<1x8x8xf32>
    %54 = vector.shape_cast %53 : vector<1x8x8xf32> to vector<1x1x8x8xf32>
    %c0_34 = arith.constant 0 : index
    %c0_35 = arith.constant 0 : index
    %c0_36 = arith.constant 0 : index
    %c0_37 = arith.constant 0 : index
    %55 = vector.load %arg9[%c0_34, %c0_35, %c0_36, %c0_37] : memref<1x4x8x8xf32, #tpu.memory_space<vmem>>, vector<1x1x8x8xf32>
    tpu.vector_store %arg9[%c0_34, %c0_35, %c0_36, %c0_37], %54 {strides = array<i32>} : memref<1x4x8x8xf32, #tpu.memory_space<vmem>>, vector<1x1x8x8xf32>,
    %56 = arith.truncf %53 : vector<1x8x8xf32> to vector<1x8x8xbf16>
    "tpu.trace_start"() <{level = 10 : i32, message = "bqk,bkd->bqd"}> : () -> ()
    %cst_38 = arith.constant dense<0.000000e+00> : vector<1x8x8xf32>
    %57 = tpu.matmul %56, %42, %cst_38 {dimension_numbers = #tpu.dot_dimension_numbers<[2], [1], [1], [2], [0, 0, 0, 1, 1, 2], [0], [0]>} : vector<1x8x8xbf16>, vector<1x8x8xbf16>, vector<1x8x8xf32> -> vector<1x8x8xf32>
    "tpu.trace_stop"() : () -> ()
    %58 = vector.shape_cast %57 : vector<1x8x8xf32> to vector<8x8xf32>
    %59 = arith.truncf %58 : vector<8x8xf32> to vector<8x8xbf16>
    %c0_39 = arith.constant 0 : index
    %c0_40 = arith.constant 0 : index
    %c0_41 = arith.constant 0 : index
    %60 = vector.load %arg6[%c0_39, %c0_40, %c0_41] : memref<4x8x32xbf16, #tpu.memory_space<vmem>>, vector<1x8x32xbf16>
    %61 = vector.shape_cast %60 : vector<1x8x32xbf16> to vector<8x32xbf16>
    %cst_42 = arith.constant dense<0.000000e+00> : vector<8x32xf32>
    %62 = tpu.matmul %59, %61, %cst_42 {dimension_numbers = #tpu.dot_dimension_numbers<[1], [0], [0], [1], [0, 0, 1, 1], [], []>} : vector<8x8xbf16>, vector<8x32xbf16>, vector<8x32xf32> -> vector<8x32xf32>
    %c0_43 = arith.constant 0 : index
    %c0_44 = arith.constant 0 : index
    %c0_45 = arith.constant 0 : index
    %63 = vector.load %arg8[%c0_43, %c0_44, %c0_45] : memref<1x8x32xf32, #tpu.memory_space<vmem>>, vector<1x8x32xf32>
    %64 = vector.shape_cast %62 : vector<8x32xf32> to vector<1x8x32xf32>
    %65 = arith.addf %63, %64 : vector<1x8x32xf32>
    %c0_46 = arith.constant 0 : index
    %c0_47 = arith.constant 0 : index
    %c0_48 = arith.constant 0 : index
    %66 = vector.load %arg8[%c0_46, %c0_47, %c0_48] : memref<1x8x32xf32, #tpu.memory_space<vmem>>, vector<1x8x32xf32>
    tpu.vector_store %arg8[%c0_46, %c0_47, %c0_48], %65 {strides = array<i32>} : memref<1x8x32xf32, #tpu.memory_space<vmem>>, vector<1x8x32xf32>,
    %67 = vector.extract_strided_slice %31 {offsets = [0, 0, 8], sizes = [1, 8, 8], strides = [1, 1, 1]} : vector<1x8x32xbf16> to vector<1x8x8xbf16>
    %68 = vector.extract_strided_slice %33 {offsets = [0, 0, 8], sizes = [1, 8, 8], strides = [1, 1, 1]} : vector<1x8x32xbf16> to vector<1x8x8xbf16>
    %69 = vector.extract_strided_slice %35 {offsets = [0, 0, 8], sizes = [1, 8, 8], strides = [1, 1, 1]} : vector<1x8x32xbf16> to vector<1x8x8xbf16>
    "tpu.trace_start"() <{level = 10 : i32, message = "bqd,bkd->bqk"}> : () -> ()
    %cst_49 = arith.constant dense<0.000000e+00> : vector<1x8x8xf32>
    %70 = tpu.matmul %67, %68, %cst_49 {dimension_numbers = #tpu.dot_dimension_numbers<[2], [2], [1], [1], [0, 0, 0, 1, 1, 1], [0], [0]>} : vector<1x8x8xbf16>, vector<1x8x8xbf16>, vector<1x8x8xf32> -> vector<1x8x8xf32>
    "tpu.trace_stop"() : () -> ()
    %cst_50 = arith.constant dense<0xFF800000> : vector<1x8xf32>
    %71 = vector.multi_reduction <maximumf>, %70, %cst_50 [2] : vector<1x8x8xf32> to vector<1x8xf32>
    %72 = vector.shape_cast %71 : vector<1x8xf32> to vector<1x8x1xf32>
    %73 = vector.broadcast %72 : vector<1x8x1xf32> to vector<1x8x8xf32>
    %74 = arith.subf %70, %73 : vector<1x8x8xf32>
    %75 = math.exp %74 : vector<1x8x8xf32>
    %cst_51 = arith.constant dense<0.000000e+00> : vector<1x8xf32>
    %76 = vector.multi_reduction <add>, %75, %cst_51 [2] : vector<1x8x8xf32> to vector<1x8xf32>
    %77 = vector.shape_cast %76 : vector<1x8xf32> to vector<1x8x1xf32>
    %78 = tpu.reciprocal %77 : vector<1x8x1xf32> -> vector<1x8x1xf32>
    %79 = vector.broadcast %78 : vector<1x8x1xf32> to vector<1x8x8xf32>
    %80 = arith.mulf %75, %79 : vector<1x8x8xf32>
    %81 = vector.shape_cast %80 : vector<1x8x8xf32> to vector<1x1x8x8xf32>
    %c0_52 = arith.constant 0 : index
    %c1_53 = arith.constant 1 : index
    %c0_54 = arith.constant 0 : index
    %c0_55 = arith.constant 0 : index
    %82 = vector.load %arg9[%c0_52, %c1_53, %c0_54, %c0_55] : memref<1x4x8x8xf32, #tpu.memory_space<vmem>>, vector<1x1x8x8xf32>
    tpu.vector_store %arg9[%c0_52, %c1_53, %c0_54, %c0_55], %81 {strides = array<i32>} : memref<1x4x8x8xf32, #tpu.memory_space<vmem>>, vector<1x1x8x8xf32>,
    %83 = arith.truncf %80 : vector<1x8x8xf32> to vector<1x8x8xbf16>
    "tpu.trace_start"() <{level = 10 : i32, message = "bqk,bkd->bqd"}> : () -> ()
    %cst_56 = arith.constant dense<0.000000e+00> : vector<1x8x8xf32>
    %84 = tpu.matmul %83, %69, %cst_56 {dimension_numbers = #tpu.dot_dimension_numbers<[2], [1], [1], [2], [0, 0, 0, 1, 1, 2], [0], [0]>} : vector<1x8x8xbf16>, vector<1x8x8xbf16>, vector<1x8x8xf32> -> vector<1x8x8xf32>
    "tpu.trace_stop"() : () -> ()
    %85 = vector.shape_cast %84 : vector<1x8x8xf32> to vector<8x8xf32>
    %86 = arith.truncf %85 : vector<8x8xf32> to vector<8x8xbf16>
    %c1_57 = arith.constant 1 : index
    %c0_58 = arith.constant 0 : index
    %c0_59 = arith.constant 0 : index
    %87 = vector.load %arg6[%c1_57, %c0_58, %c0_59] : memref<4x8x32xbf16, #tpu.memory_space<vmem>>, vector<1x8x32xbf16>
    %88 = vector.shape_cast %87 : vector<1x8x32xbf16> to vector<8x32xbf16>
    %cst_60 = arith.constant dense<0.000000e+00> : vector<8x32xf32>
    %89 = tpu.matmul %86, %88, %cst_60 {dimension_numbers = #tpu.dot_dimension_numbers<[1], [0], [0], [1], [0, 0, 1, 1], [], []>} : vector<8x8xbf16>, vector<8x32xbf16>, vector<8x32xf32> -> vector<8x32xf32>
    %c0_61 = arith.constant 0 : index
    %c0_62 = arith.constant 0 : index
    %c0_63 = arith.constant 0 : index
    %90 = vector.load %arg8[%c0_61, %c0_62, %c0_63] : memref<1x8x32xf32, #tpu.memory_space<vmem>>, vector<1x8x32xf32>
    %91 = vector.shape_cast %89 : vector<8x32xf32> to vector<1x8x32xf32>
    %92 = arith.addf %90, %91 : vector<1x8x32xf32>
    %c0_64 = arith.constant 0 : index
    %c0_65 = arith.constant 0 : index
    %c0_66 = arith.constant 0 : index
    %93 = vector.load %arg8[%c0_64, %c0_65, %c0_66] : memref<1x8x32xf32, #tpu.memory_space<vmem>>, vector<1x8x32xf32>
    tpu.vector_store %arg8[%c0_64, %c0_65, %c0_66], %92 {strides = array<i32>} : memref<1x8x32xf32, #tpu.memory_space<vmem>>, vector<1x8x32xf32>,
    %94 = vector.extract_strided_slice %31 {offsets = [0, 0, 16], sizes = [1, 8, 8], strides = [1, 1, 1]} : vector<1x8x32xbf16> to vector<1x8x8xbf16>
    %95 = vector.extract_strided_slice %33 {offsets = [0, 0, 16], sizes = [1, 8, 8], strides = [1, 1, 1]} : vector<1x8x32xbf16> to vector<1x8x8xbf16>
    %96 = vector.extract_strided_slice %35 {offsets = [0, 0, 16], sizes = [1, 8, 8], strides = [1, 1, 1]} : vector<1x8x32xbf16> to vector<1x8x8xbf16>
    "tpu.trace_start"() <{level = 10 : i32, message = "bqd,bkd->bqk"}> : () -> ()
    %cst_67 = arith.constant dense<0.000000e+00> : vector<1x8x8xf32>
    %97 = tpu.matmul %94, %95, %cst_67 {dimension_numbers = #tpu.dot_dimension_numbers<[2], [2], [1], [1], [0, 0, 0, 1, 1, 1], [0], [0]>} : vector<1x8x8xbf16>, vector<1x8x8xbf16>, vector<1x8x8xf32> -> vector<1x8x8xf32>
    "tpu.trace_stop"() : () -> ()
    %cst_68 = arith.constant dense<0xFF800000> : vector<1x8xf32>
    %98 = vector.multi_reduction <maximumf>, %97, %cst_68 [2] : vector<1x8x8xf32> to vector<1x8xf32>
    %99 = vector.shape_cast %98 : vector<1x8xf32> to vector<1x8x1xf32>
    %100 = vector.broadcast %99 : vector<1x8x1xf32> to vector<1x8x8xf32>
    %101 = arith.subf %97, %100 : vector<1x8x8xf32>
    %102 = math.exp %101 : vector<1x8x8xf32>
    %cst_69 = arith.constant dense<0.000000e+00> : vector<1x8xf32>
    %103 = vector.multi_reduction <add>, %102, %cst_69 [2] : vector<1x8x8xf32> to vector<1x8xf32>
    %104 = vector.shape_cast %103 : vector<1x8xf32> to vector<1x8x1xf32>
    %105 = tpu.reciprocal %104 : vector<1x8x1xf32> -> vector<1x8x1xf32>
    %106 = vector.broadcast %105 : vector<1x8x1xf32> to vector<1x8x8xf32>
    %107 = arith.mulf %102, %106 : vector<1x8x8xf32>
    %108 = vector.shape_cast %107 : vector<1x8x8xf32> to vector<1x1x8x8xf32>
    %c0_70 = arith.constant 0 : index
    %c2_71 = arith.constant 2 : index
    %c0_72 = arith.constant 0 : index
    %c0_73 = arith.constant 0 : index
    %109 = vector.load %arg9[%c0_70, %c2_71, %c0_72, %c0_73] : memref<1x4x8x8xf32, #tpu.memory_space<vmem>>, vector<1x1x8x8xf32>
    tpu.vector_store %arg9[%c0_70, %c2_71, %c0_72, %c0_73], %108 {strides = array<i32>} : memref<1x4x8x8xf32, #tpu.memory_space<vmem>>, vector<1x1x8x8xf32>,
    %110 = arith.truncf %107 : vector<1x8x8xf32> to vector<1x8x8xbf16>
    "tpu.trace_start"() <{level = 10 : i32, message = "bqk,bkd->bqd"}> : () -> ()
    %cst_74 = arith.constant dense<0.000000e+00> : vector<1x8x8xf32>
    %111 = tpu.matmul %110, %96, %cst_74 {dimension_numbers = #tpu.dot_dimension_numbers<[2], [1], [1], [2], [0, 0, 0, 1, 1, 2], [0], [0]>} : vector<1x8x8xbf16>, vector<1x8x8xbf16>, vector<1x8x8xf32> -> vector<1x8x8xf32>
    "tpu.trace_stop"() : () -> ()
    %112 = vector.shape_cast %111 : vector<1x8x8xf32> to vector<8x8xf32>
    %113 = arith.truncf %112 : vector<8x8xf32> to vector<8x8xbf16>
    %c2_75 = arith.constant 2 : index
    %c0_76 = arith.constant 0 : index
    %c0_77 = arith.constant 0 : index
    %114 = vector.load %arg6[%c2_75, %c0_76, %c0_77] : memref<4x8x32xbf16, #tpu.memory_space<vmem>>, vector<1x8x32xbf16>
    %115 = vector.shape_cast %114 : vector<1x8x32xbf16> to vector<8x32xbf16>
    %cst_78 = arith.constant dense<0.000000e+00> : vector<8x32xf32>
    %116 = tpu.matmul %113, %115, %cst_78 {dimension_numbers = #tpu.dot_dimension_numbers<[1], [0], [0], [1], [0, 0, 1, 1], [], []>} : vector<8x8xbf16>, vector<8x32xbf16>, vector<8x32xf32> -> vector<8x32xf32>
    %c0_79 = arith.constant 0 : index
    %c0_80 = arith.constant 0 : index
    %c0_81 = arith.constant 0 : index
    %117 = vector.load %arg8[%c0_79, %c0_80, %c0_81] : memref<1x8x32xf32, #tpu.memory_space<vmem>>, vector<1x8x32xf32>
    %118 = vector.shape_cast %116 : vector<8x32xf32> to vector<1x8x32xf32>
    %119 = arith.addf %117, %118 : vector<1x8x32xf32>
    %c0_82 = arith.constant 0 : index
    %c0_83 = arith.constant 0 : index
    %c0_84 = arith.constant 0 : index
    %120 = vector.load %arg8[%c0_82, %c0_83, %c0_84] : memref<1x8x32xf32, #tpu.memory_space<vmem>>, vector<1x8x32xf32>
    tpu.vector_store %arg8[%c0_82, %c0_83, %c0_84], %119 {strides = array<i32>} : memref<1x8x32xf32, #tpu.memory_space<vmem>>, vector<1x8x32xf32>,
    %121 = vector.extract_strided_slice %31 {offsets = [0, 0, 24], sizes = [1, 8, 8], strides = [1, 1, 1]} : vector<1x8x32xbf16> to vector<1x8x8xbf16>
    %122 = vector.extract_strided_slice %33 {offsets = [0, 0, 24], sizes = [1, 8, 8], strides = [1, 1, 1]} : vector<1x8x32xbf16> to vector<1x8x8xbf16>
    %123 = vector.extract_strided_slice %35 {offsets = [0, 0, 24], sizes = [1, 8, 8], strides = [1, 1, 1]} : vector<1x8x32xbf16> to vector<1x8x8xbf16>
    "tpu.trace_start"() <{level = 10 : i32, message = "bqd,bkd->bqk"}> : () -> ()
    %cst_85 = arith.constant dense<0.000000e+00> : vector<1x8x8xf32>
    %124 = tpu.matmul %121, %122, %cst_85 {dimension_numbers = #tpu.dot_dimension_numbers<[2], [2], [1], [1], [0, 0, 0, 1, 1, 1], [0], [0]>} : vector<1x8x8xbf16>, vector<1x8x8xbf16>, vector<1x8x8xf32> -> vector<1x8x8xf32>
    "tpu.trace_stop"() : () -> ()
    %cst_86 = arith.constant dense<0xFF800000> : vector<1x8xf32>
    %125 = vector.multi_reduction <maximumf>, %124, %cst_86 [2] : vector<1x8x8xf32> to vector<1x8xf32>
    %126 = vector.shape_cast %125 : vector<1x8xf32> to vector<1x8x1xf32>
    %127 = vector.broadcast %126 : vector<1x8x1xf32> to vector<1x8x8xf32>
    %128 = arith.subf %124, %127 : vector<1x8x8xf32>
    %129 = math.exp %128 : vector<1x8x8xf32>
    %cst_87 = arith.constant dense<0.000000e+00> : vector<1x8xf32>
    %130 = vector.multi_reduction <add>, %129, %cst_87 [2] : vector<1x8x8xf32> to vector<1x8xf32>
    %131 = vector.shape_cast %130 : vector<1x8xf32> to vector<1x8x1xf32>
    %132 = tpu.reciprocal %131 : vector<1x8x1xf32> -> vector<1x8x1xf32>
    %133 = vector.broadcast %132 : vector<1x8x1xf32> to vector<1x8x8xf32>
    %134 = arith.mulf %129, %133 : vector<1x8x8xf32>
    %135 = vector.shape_cast %134 : vector<1x8x8xf32> to vector<1x1x8x8xf32>
    %c0_88 = arith.constant 0 : index
    %c3 = arith.constant 3 : index
    %c0_89 = arith.constant 0 : index
    %c0_90 = arith.constant 0 : index
    %136 = vector.load %arg9[%c0_88, %c3, %c0_89, %c0_90] : memref<1x4x8x8xf32, #tpu.memory_space<vmem>>, vector<1x1x8x8xf32>
    tpu.vector_store %arg9[%c0_88, %c3, %c0_89, %c0_90], %135 {strides = array<i32>} : memref<1x4x8x8xf32, #tpu.memory_space<vmem>>, vector<1x1x8x8xf32>,
    %137 = arith.truncf %134 : vector<1x8x8xf32> to vector<1x8x8xbf16>
    "tpu.trace_start"() <{level = 10 : i32, message = "bqk,bkd->bqd"}> : () -> ()
    %cst_91 = arith.constant dense<0.000000e+00> : vector<1x8x8xf32>
    %138 = tpu.matmul %137, %123, %cst_91 {dimension_numbers = #tpu.dot_dimension_numbers<[2], [1], [1], [2], [0, 0, 0, 1, 1, 2], [0], [0]>} : vector<1x8x8xbf16>, vector<1x8x8xbf16>, vector<1x8x8xf32> -> vector<1x8x8xf32>
    "tpu.trace_stop"() : () -> ()
    %139 = vector.shape_cast %138 : vector<1x8x8xf32> to vector<8x8xf32>
    %140 = arith.truncf %139 : vector<8x8xf32> to vector<8x8xbf16>
    %c3_92 = arith.constant 3 : index
    %c0_93 = arith.constant 0 : index
    %c0_94 = arith.constant 0 : index
    %141 = vector.load %arg6[%c3_92, %c0_93, %c0_94] : memref<4x8x32xbf16, #tpu.memory_space<vmem>>, vector<1x8x32xbf16>
    %142 = vector.shape_cast %141 : vector<1x8x32xbf16> to vector<8x32xbf16>
    %cst_95 = arith.constant dense<0.000000e+00> : vector<8x32xf32>
    %143 = tpu.matmul %140, %142, %cst_95 {dimension_numbers = #tpu.dot_dimension_numbers<[1], [0], [0], [1], [0, 0, 1, 1], [], []>} : vector<8x8xbf16>, vector<8x32xbf16>, vector<8x32xf32> -> vector<8x32xf32>
    %c0_96 = arith.constant 0 : index
    %c0_97 = arith.constant 0 : index
    %c0_98 = arith.constant 0 : index
    %144 = vector.load %arg8[%c0_96, %c0_97, %c0_98] : memref<1x8x32xf32, #tpu.memory_space<vmem>>, vector<1x8x32xf32>
    %145 = vector.shape_cast %143 : vector<8x32xf32> to vector<1x8x32xf32>
    %146 = arith.addf %144, %145 : vector<1x8x32xf32>
    %c0_99 = arith.constant 0 : index
    %c0_100 = arith.constant 0 : index
    %c0_101 = arith.constant 0 : index
    %147 = vector.load %arg8[%c0_99, %c0_100, %c0_101] : memref<1x8x32xf32, #tpu.memory_space<vmem>>, vector<1x8x32xf32>
    tpu.vector_store %arg8[%c0_99, %c0_100, %c0_101], %146 {strides = array<i32>} : memref<1x8x32xf32, #tpu.memory_space<vmem>>, vector<1x8x32xf32>,
    return
  }
  func.func @transform_0(%arg0: i32) -> (i32, i32, i32) {
    %c0_i32 = arith.constant 0 : i32
    %c0_i32_0 = arith.constant 0 : i32
    %c0_i32_1 = arith.constant 0 : i32
    return %arg0, %c0_i32, %c0_i32_0 : i32, i32, i32
  }
  func.func @transform_1(%arg0: i32) -> (i32, i32, i32) {
    %c0_i32 = arith.constant 0 : i32
    %c0_i32_0 = arith.constant 0 : i32
    %c0_i32_1 = arith.constant 0 : i32
    return %arg0, %c0_i32, %c0_i32_0 : i32, i32, i32
  }
  func.func @transform_2(%arg0: i32) -> (i32, i32, i32) {
    %c0_i32 = arith.constant 0 : i32
    %c0_i32_0 = arith.constant 0 : i32
    %c0_i32_1 = arith.constant 0 : i32
    return %arg0, %c0_i32, %c0_i32_0 : i32, i32, i32
  }
  func.func @transform_3(%arg0: i32) -> (i32, i32, i32) {
    %c0_i32 = arith.constant 0 : i32
    %c0_i32_0 = arith.constant 0 : i32
    %c0_i32_1 = arith.constant 0 : i32
    %c0_i32_2 = arith.constant 0 : i32
    return %c0_i32, %c0_i32_0, %c0_i32_1 : i32, i32, i32
  }
  func.func @transform_4(%arg0: i32) -> (i32, i32, i32) {
    %c0_i32 = arith.constant 0 : i32
    %c0_i32_0 = arith.constant 0 : i32
    %c0_i32_1 = arith.constant 0 : i32
    %c0_i32_2 = arith.constant 0 : i32
    return %c0_i32, %c0_i32_0, %c0_i32_1 : i32, i32, i32
  }
  func.func @transform_5(%arg0: i32) -> (i32, i32, i32) {
    %c0_i32 = arith.constant 0 : i32
    %c0_i32_0 = arith.constant 0 : i32
    %c0_i32_1 = arith.constant 0 : i32
    %c0_i32_2 = arith.constant 0 : i32
    return %c0_i32, %c0_i32_0, %c0_i32_1 : i32, i32, i32
  }
  func.func @transform_6(%arg0: i32) -> (i32, i32) {
    %c0_i32 = arith.constant 0 : i32
    %c0_i32_0 = arith.constant 0 : i32
    %c0_i32_1 = arith.constant 0 : i32
    return %c0_i32, %c0_i32_0 : i32, i32
  }
  func.func @transform_7(%arg0: i32) -> (i32, i32, i32) {
    %c0_i32 = arith.constant 0 : i32
    %c0_i32_0 = arith.constant 0 : i32
    %c0_i32_1 = arith.constant 0 : i32
    return %arg0, %c0_i32, %c0_i32_0 : i32, i32, i32
  }
  func.func @transform_8(%arg0: i32) -> (i32, i32, i32, i32) {
    %c0_i32 = arith.constant 0 : i32
    %c0_i32_0 = arith.constant 0 : i32
    %c0_i32_1 = arith.constant 0 : i32
    %c0_i32_2 = arith.constant 0 : i32
    return %arg0, %c0_i32, %c0_i32_0, %c0_i32_1 : i32, i32, i32, i32
  }
}

</mosaic_0001>

<llo_original>
// kernel: tpu_custom_call.1
$region0: #{tpu_custom_call.1}
  #allocation0 [shape = 'u32[]', space=smem, size = 0x4, offset = 0x4, fixed_abs, tag = 'smem constant byte address 0x4 - core index']
  #allocation1 [shape = 'u32[144,128]{1,0:T(1,128)}', space=vmem, size = 0x12000, scoped, tag = 'internal scratch']
  %s0 = inlined_call_operand.hbm [shape: f32[2,8,32], index: 0, kind: input, shape index: {}]
  %s1 = inlined_call_operand.hbm [shape: f32[2,8,32], index: 1, kind: input, shape index: {}]
  %s2 = inlined_call_operand.hbm [shape: f32[2,8,32], index: 2, kind: input, shape index: {}]
  %s3 = inlined_call_operand.hbm [shape: bf16[3,32,32], index: 3, kind: input, shape index: {}]
  %s4 = inlined_call_operand.hbm [shape: f32[3,1,32], index: 4, kind: input, shape index: {}]
  %s5 = inlined_call_operand.vmem [shape: bf16[4,8,32], index: 5, kind: input, shape index: {}]
  %s6 = inlined_call_operand.vmem [shape: f32[1,32], index: 6, kind: input, shape index: {}]
  %s7 = inlined_call_operand.hbm [shape: f32[2,8,32], index: 7, kind: output, shape index: {0}]
  %s8 = inlined_call_operand.hbm [shape: f32[2,4,8,8], index: 8, kind: output, shape index: {1}]
  %9 = xla_tuple %s7, %s8
  %s10 = sld [smem:[#allocation0]]
  $region89: #{tpu_custom_call.1} parent=0
    _
  %s12 = ssub.s32 1, %s10
  %s13 = scalar_select 0, %s12, %s10
  $region1: #{tpu_custom_call.1} parent=0
    #allocation2 [shape = 'u8[8192]{0}', space=vmem, size = 0x2000, scoped, tag = 'input window, operand 0']
    #allocation3 [shape = 's32[2]{0}', space=sflag, size = 0x8, scoped, tag = 'scoped memory for tpu_custom_call.1']
    #allocation4 [shape = 's32[2]{0}', space=sflag, size = 0x8, scoped, tag = 'scoped memory for tpu_custom_call.1']
    #allocation5 [shape = 'u8[8192]{0}', space=vmem, size = 0x2000, scoped, tag = 'input window, operand 1']
    #allocation6 [shape = 's32[2]{0}', space=sflag, size = 0x8, scoped, tag = 'scoped memory for tpu_custom_call.1']
    #allocation7 [shape = 'u8[8192]{0}', space=vmem, size = 0x2000, scoped, tag = 'input window, operand 2']
    #allocation8 [shape = 'u8[24576]{0}', space=vmem, size = 0x6000, scoped, tag = 'input window, operand 3, single buffered']
    #allocation9 [shape = 's32[1]{0}', space=sflag, size = 0x4, scoped, tag = 'scoped memory for tpu_custom_call.1']
    #allocation10 [shape = 'u8[1536]{0}', space=vmem, size = 0x800, scoped, tag = 'input window, operand 4, single buffered']
    #allocation11 [shape = 'u8[8192]{0}', space=vmem, size = 0x2000, scoped, tag = 'output window, operand 0']
    #allocation12 [shape = 'u8[32768]{0}', space=vmem, size = 0x8000, scoped, tag = 'output window, operand 1']
    #allocation13 [shape = 's32[2]{0}', space=sflag, size = 0x8, scoped, tag = 'scoped memory for tpu_custom_call.1']
    %14 = vsyncpa [#allocation3], 0
    %s15 = scalar_lea.sflag [#allocation3], 1
    %16 = vsyncpa %s15, 0
    %17 = vsyncpa [#allocation6], 0
    %s18 = scalar_lea.sflag [#allocation6], 1
    %19 = vsyncpa %s18, 0
    %20 = vsyncpa [#allocation9], 0
    %21 = vsyncpa [#allocation4], 0
    %s22 = scalar_lea.sflag [#allocation4], 1
    %23 = vsyncpa %s22, 0
    %24 = vsyncpa [#allocation13], 0
    %s25 = scalar_lea.sflag [#allocation13], 1
    %26 = vsyncpa %s25, 0
    loop: start=0, step=1, limit=4
    $region2: #{tpu_custom_call.1} parent=1 // loop_pre_header
      _
    $region3: #{tpu_custom_call.1} parent=1 // loop_header
      %s28 = sphi 0, %s32
      %p29 = scmp.ge.s32.totalorder %s28, 4
      %s38 = sphi 0, %s40
      %s41 = sphi 0, %s38
      %s42 = sphi 0, %s41
      %s58 = sphi 0, %s42
      %s64 = sphi 0, %s66
      %s67 = sphi 0, %s64
      %s68 = sphi 0, %s67
      %s84 = sphi 0, %s68
      %s90 = sphi 0, %s92
      %s93 = sphi 0, %s90
      %s94 = sphi 0, %s93
      %s110 = sphi 0, %s94
      %s114 = sphi 0, %s114
      %s116 = sphi 0, %s114
      %s117 = sphi 0, %s116
      %s131 = sphi 0, %s117
      %s135 = sphi 0, %s135
      %s137 = sphi 0, %s135
      %s138 = sphi 0, %s137
      %s152 = sphi 0, %s138
      %s156 = sphi 0, %s156
      %s158 = sphi 0, %s156
      %s159 = sphi 0, %s158
      %s173 = sphi 0, %s159
      %s177 = sphi 0, %s177
      %s179 = sphi 0, %s177
      %s180 = sphi 0, %s179
      %s194 = sphi 0, %s180
      %s200 = sphi 0, %s202
      %s203 = sphi 0, %s200
      %s204 = sphi 0, %s203
      %s220 = sphi 0, %s204
      %s226 = sphi 0, %s228
      %s229 = sphi 0, %s226
      %s230 = sphi 0, %s229
      %s246 = sphi 0, %s230
    $region4: #{tpu_custom_call.1} parent=1 // loop_header_branch
      %31 = sbr.rel (%p29) target = $region8
    $region5: #{tpu_custom_call.1} parent=1 // loop_body
      %s33 = ssub.s32 %s28, 1
      %s34 = ssub.s32 %s28, 2
      %s35 = sadd.s32 %s28, 1
      %s36 = ssub.s32 %s28, %s35
      %p37 = scmp.eq.s32.totalorder %s36, 0
      %s39 = sadd.s32 %s38, 1
      %s40 = scalar_select %p37, %s38, %s39
      %p43 = pneg %p37
      %p44 = scmp.eq.s32.totalorder %s28, 1
      %p45 = por %p43, %p44
      %p46 = scmp.ne.s32.totalorder %s38, %s41
      %p47 = scmp.eq.s32.totalorder %s28, 0
      %p48 = por %p46, %p47
      %p49 = scmp.ne.s32.totalorder %s38, %s41
      %p50 = scmp.eq.s32.totalorder %s33, 1
      %p51 = por %p49, %p50
      %p52 = scmp.ne.s32.totalorder %s41, %s42
      %p53 = scmp.eq.s32.totalorder %s33, 0
      %p54 = por %p52, %p53
      %p55 = scmp.ne.s32.totalorder %s41, %s42
      %p56 = scmp.eq.s32.totalorder %s34, 1
      %p57 = por %p55, %p56
      %p59 = scmp.ne.s32.totalorder %s42, %s58
      %p60 = scmp.eq.s32.totalorder %s34, 0
      %p61 = por %p59, %p60
      %s62 = ssub.s32 %s28, %s35
      %p63 = scmp.eq.s32.totalorder %s62, 0
      %s65 = sadd.s32 %s64, 1
      %s66 = scalar_select %p63, %s64, %s65
      %p69 = pneg %p63
      %p70 = scmp.eq.s32.totalorder %s28, 1
      %p71 = por %p69, %p70
      %p72 = scmp.ne.s32.totalorder %s64, %s67
      %p73 = scmp.eq.s32.totalorder %s28, 0
      %p74 = por %p72, %p73
      %p75 = scmp.ne.s32.totalorder %s64, %s67
      %p76 = scmp.eq.s32.totalorder %s33, 1
      %p77 = por %p75, %p76
      %p78 = scmp.ne.s32.totalorder %s67, %s68
      %p79 = scmp.eq.s32.totalorder %s33, 0
      %p80 = por %p78, %p79
      %p81 = scmp.ne.s32.totalorder %s67, %s68
      %p82 = scmp.eq.s32.totalorder %s34, 1
      %p83 = por %p81, %p82
      %p85 = scmp.ne.s32.totalorder %s68, %s84
      %p86 = scmp.eq.s32.totalorder %s34, 0
      %p87 = por %p85, %p86
      %s88 = ssub.s32 %s28, %s35
      %p89 = scmp.eq.s32.totalorder %s88, 0
      %s91 = sadd.s32 %s90, 1
      %s92 = scalar_select %p89, %s90, %s91
      %p95 = pneg %p89
      %p96 = scmp.eq.s32.totalorder %s28, 1
      %p97 = por %p95, %p96
      %p98 = scmp.ne.s32.totalorder %s90, %s93
      %p99 = scmp.eq.s32.totalorder %s28, 0
      %p100 = por %p98, %p99
      %p101 = scmp.ne.s32.totalorder %s90, %s93
      %p102 = scmp.eq.s32.totalorder %s33, 1
      %p103 = por %p101, %p102
      %p104 = scmp.ne.s32.totalorder %s93, %s94
      %p105 = scmp.eq.s32.totalorder %s33, 0
      %p106 = por %p104, %p105
      %p107 = scmp.ne.s32.totalorder %s93, %s94
      %p108 = scmp.eq.s32.totalorder %s34, 1
      %p109 = por %p107, %p108
      %p111 = scmp.ne.s32.totalorder %s94, %s110
      %p112 = scmp.eq.s32.totalorder %s34, 0
      %p113 = por %p111, %p112
      %s115 = sadd.s32 %s114, 1
      %p118 = scmp.eq.s32.totalorder %s28, 1
      %p119 = scmp.ne.s32.totalorder %s114, %s116
      %p120 = scmp.eq.s32.totalorder %s28, 0
      %p121 = por %p119, %p120
      %p122 = scmp.ne.s32.totalorder %s114, %s116
      %p123 = scmp.eq.s32.totalorder %s33, 1
      %p124 = por %p122, %p123
      %p125 = scmp.ne.s32.totalorder %s116, %s117
      %p126 = scmp.eq.s32.totalorder %s33, 0
      %p127 = por %p125, %p126
      %p128 = scmp.ne.s32.totalorder %s116, %s117
      %p129 = scmp.eq.s32.totalorder %s34, 1
      %p130 = por %p128, %p129
      %p132 = scmp.ne.s32.totalorder %s117, %s131
      %p133 = scmp.eq.s32.totalorder %s34, 0
      %p134 = por %p132, %p133
      %s136 = sadd.s32 %s135, 1
      %p139 = scmp.eq.s32.totalorder %s28, 1
      %p140 = scmp.ne.s32.totalorder %s135, %s137
      %p141 = scmp.eq.s32.totalorder %s28, 0
      %p142 = por %p140, %p141
      %p143 = scmp.ne.s32.totalorder %s135, %s137
      %p144 = scmp.eq.s32.totalorder %s33, 1
      %p145 = por %p143, %p144
      %p146 = scmp.ne.s32.totalorder %s137, %s138
      %p147 = scmp.eq.s32.totalorder %s33, 0
      %p148 = por %p146, %p147
      %p149 = scmp.ne.s32.totalorder %s137, %s138
      %p150 = scmp.eq.s32.totalorder %s34, 1
      %p151 = por %p149, %p150
      %p153 = scmp.ne.s32.totalorder %s138, %s152
      %p154 = scmp.eq.s32.totalorder %s34, 0
      %p155 = por %p153, %p154
      %s157 = sadd.s32 %s156, 1
      %p160 = scmp.eq.s32.totalorder %s28, 1
      %p161 = scmp.ne.s32.totalorder %s156, %s158
      %p162 = scmp.eq.s32.totalorder %s28, 0
      %p163 = por %p161, %p162
      %p164 = scmp.ne.s32.totalorder %s156, %s158
      %p165 = scmp.eq.s32.totalorder %s33, 1
      %p166 = por %p164, %p165
      %p167 = scmp.ne.s32.totalorder %s158, %s159
      %p168 = scmp.eq.s32.totalorder %s33, 0
      %p169 = por %p167, %p168
      %p170 = scmp.ne.s32.totalorder %s158, %s159
      %p171 = scmp.eq.s32.totalorder %s34, 1
      %p172 = por %p170, %p171
      %p174 = scmp.ne.s32.totalorder %s159, %s173
      %p175 = scmp.eq.s32.totalorder %s34, 0
      %p176 = por %p174, %p175
      %s178 = sadd.s32 %s177, 1
      %p181 = scmp.eq.s32.totalorder %s28, 1
      %p182 = scmp.ne.s32.totalorder %s177, %s179
      %p183 = scmp.eq.s32.totalorder %s28, 0
      %p184 = por %p182, %p183
      %p185 = scmp.ne.s32.totalorder %s177, %s179
      %p186 = scmp.eq.s32.totalorder %s33, 1
      %p187 = por %p185, %p186
      %p188 = scmp.ne.s32.totalorder %s179, %s180
      %p189 = scmp.eq.s32.totalorder %s33, 0
      %p190 = por %p188, %p189
      %p191 = scmp.ne.s32.totalorder %s179, %s180
      %p192 = scmp.eq.s32.totalorder %s34, 1
      %p193 = por %p191, %p192
      %p195 = scmp.ne.s32.totalorder %s180, %s194
      %p196 = scmp.eq.s32.totalorder %s34, 0
      %p197 = por %p195, %p196
      %s198 = ssub.s32 %s28, %s35
      %p199 = scmp.eq.s32.totalorder %s198, 0
      %s201 = sadd.s32 %s200, 1
      %s202 = scalar_select %p199, %s200, %s201
      %p205 = pneg %p199
      %p206 = scmp.eq.s32.totalorder %s28, 1
      %p207 = por %p205, %p206
      %p208 = scmp.ne.s32.totalorder %s200, %s203
      %p209 = scmp.eq.s32.totalorder %s28, 0
      %p210 = por %p208, %p209
      %p211 = scmp.ne.s32.totalorder %s200, %s203
      %p212 = scmp.eq.s32.totalorder %s33, 1
      %p213 = por %p211, %p212
      %p214 = scmp.ne.s32.totalorder %s203, %s204
      %p215 = scmp.eq.s32.totalorder %s33, 0
      %p216 = por %p214, %p215
      %p217 = scmp.ne.s32.totalorder %s203, %s204
      %p218 = scmp.eq.s32.totalorder %s34, 1
      %p219 = por %p217, %p218
      %p221 = scmp.ne.s32.totalorder %s204, %s220
      %p222 = scmp.eq.s32.totalorder %s34, 0
      %p223 = por %p221, %p222
      %s224 = ssub.s32 %s28, %s35
      %p225 = scmp.eq.s32.totalorder %s224, 0
      %s227 = sadd.s32 %s226, 1
      %s228 = scalar_select %p225, %s226, %s227
      %p231 = pneg %p225
      %p232 = scmp.eq.s32.totalorder %s28, 1
      %p233 = por %p231, %p232
      %p234 = scmp.ne.s32.totalorder %s226, %s229
      %p235 = scmp.eq.s32.totalorder %s28, 0
      %p236 = por %p234, %p235
      %p237 = scmp.ne.s32.totalorder %s226, %s229
      %p238 = scmp.eq.s32.totalorder %s33, 1
      %p239 = por %p237, %p238
      %p240 = scmp.ne.s32.totalorder %s229, %s230
      %p241 = scmp.eq.s32.totalorder %s33, 0
      %p242 = por %p240, %p241
      %p243 = scmp.ne.s32.totalorder %s229, %s230
      %p244 = scmp.eq.s32.totalorder %s34, 1
      %p245 = por %p243, %p244
      %p247 = scmp.ne.s32.totalorder %s230, %s246
      %p248 = scmp.eq.s32.totalorder %s34, 0
      %p249 = por %p247, %p248
      %p250 = scmp.le.s32.totalorder 1, %s28
      %p251 = scmp.lt.s32.totalorder %s28, 3
      %p252 = pnand %p250, %p251
      %p253 = pneg %p252
      // Predicated region
      $region9: #{tpu_custom_call.1} parent=5 // pred_check
        _
      $region10: #{tpu_custom_call.1} parent=5 // pred_check_branch
        %255 = sbr.rel (%p252) target = $region12
      $region11: #{tpu_custom_call.1} parent=5 // pred_region
        %s256 = ssub.s32 %s28, 1
        // Predicated region
        $region13: #{tpu_custom_call.1} parent=11 // pred_check
          %p257 = pneg %p127
        $region14: #{tpu_custom_call.1} parent=11 // pred_check_branch
          %259 = sbr.rel (%p257) target = $region16
        $region15: #{tpu_custom_call.1} parent=11 // pred_region
          %s261 = ssub.s32 768, 768
          %262 = vsyncadd [#allocation9], %s261
          %s263 = sshll.u32 [#allocation8], 4
          %s264 = int_to_ptr.vmem [resolvable:$true] %s263
          %269 = dma.hbm_to_vmem [thread:$0]  %s3, 768, %s264, [#allocation9], 64, 64, 4
        $region16: #{tpu_custom_call.1} parent=11 // pred_fallthru
          _
        // Predicated region
        $region17: #{tpu_custom_call.1} parent=11 // pred_check
          %p270 = pneg %p148
        $region18: #{tpu_custom_call.1} parent=11 // pred_check_branch
          %272 = sbr.rel (%p270) target = $region20
        $region19: #{tpu_custom_call.1} parent=11 // pred_region
          %s274 = ssub.s32 48, 48
          %275 = vsyncadd [#allocation9], %s274
          %s276 = sshll.u32 [#allocation10], 4
          %s277 = int_to_ptr.vmem [resolvable:$true] %s276
          %282 = dma.hbm_to_vmem [thread:$0]  %s4, 48, %s277, [#allocation9], 16, 16, 1
        $region20: #{tpu_custom_call.1} parent=11 // pred_fallthru
          _
        // Predicated region
        $region21: #{tpu_custom_call.1} parent=11 // pred_check
          %p283 = pneg %p169
        $region22: #{tpu_custom_call.1} parent=11 // pred_check_branch
          %285 = sbr.rel (%p283) target = $region24
        $region23: #{tpu_custom_call.1} parent=11 // pred_region
          _
        $region24: #{tpu_custom_call.1} parent=11 // pred_fallthru
          _
        // Predicated region
        $region25: #{tpu_custom_call.1} parent=11 // pred_check
          %p286 = pneg %p190
        $region26: #{tpu_custom_call.1} parent=11 // pred_check_branch
          %288 = sbr.rel (%p286) target = $region28
        $region27: #{tpu_custom_call.1} parent=11 // pred_region
          _
        $region28: #{tpu_custom_call.1} parent=11 // pred_fallthru
          _
      $region12: #{tpu_custom_call.1} parent=5 // pred_fallthru
        _
      %p289 = scmp.lt.s32.totalorder %s28, 2
      // Predicated region
      $region29: #{tpu_custom_call.1} parent=5 // pred_check
        %p290 = pneg %p289
      $region30: #{tpu_custom_call.1} parent=5 // pred_check_branch
        %292 = sbr.rel (%p290) target = $region32
      $region31: #{tpu_custom_call.1} parent=5 // pred_region
        // Predicated region
        $region33: #{tpu_custom_call.1} parent=31 // pred_check
          %p293 = pneg %p48
        $region34: #{tpu_custom_call.1} parent=31 // pred_check_branch
          %295 = sbr.rel (%p293) target = $region36
        $region35: #{tpu_custom_call.1} parent=31 // pred_region
          %s296 = sand.u32 %s38, 1
          %s297 = scalar_lea.sflag [#allocation3], %s296
          %s298 = sand.u32 %s38, 1
          %s299 = smul.addr %s298, 8
          %s300 = scalar_lea.vmem [#allocation2], %s299
          %s302 = ssub.s32 128, 128
          %303 = vsyncadd %s297, %s302
          %s304 = smul.addr %s28, 128
          %s305 = scalar_lea.hbm %s0, %s304
          %s307 = sshll.u32 %s300, 4
          %s308 = int_to_ptr.vmem [resolvable:$true] %s307
          %310 = dma.hbm_to_vmem [thread:$0]  %s305, 128, %s308, %s297
        $region36: #{tpu_custom_call.1} parent=31 // pred_fallthru
          _
        // Predicated region
        $region37: #{tpu_custom_call.1} parent=31 // pred_check
          %p311 = pneg %p74
        $region38: #{tpu_custom_call.1} parent=31 // pred_check_branch
          %313 = sbr.rel (%p311) target = $region40
        $region39: #{tpu_custom_call.1} parent=31 // pred_region
          %s314 = sand.u32 %s28, 1
          %s315 = scalar_lea.sflag [#allocation6], %s314
          %s316 = sand.u32 %s64, 1
          %s317 = smul.addr %s316, 8
          %s318 = scalar_lea.vmem [#allocation5], %s317
          %s320 = ssub.s32 128, 128
          %321 = vsyncadd %s315, %s320
          %s322 = smul.addr %s28, 128
          %s323 = scalar_lea.hbm %s1, %s322
          %s325 = sshll.u32 %s318, 4
          %s326 = int_to_ptr.vmem [resolvable:$true] %s325
          %328 = dma.hbm_to_vmem [thread:$0]  %s323, 128, %s326, %s315
        $region40: #{tpu_custom_call.1} parent=31 // pred_fallthru
          _
        // Predicated region
        $region41: #{tpu_custom_call.1} parent=31 // pred_check
          %p329 = pneg %p100
        $region42: #{tpu_custom_call.1} parent=31 // pred_check_branch
          %331 = sbr.rel (%p329) target = $region44
        $region43: #{tpu_custom_call.1} parent=31 // pred_region
          %s332 = sand.u32 %s28, 1
          %s333 = scalar_lea.sflag [#allocation6], %s332
          %s334 = sand.u32 %s90, 1
          %s335 = smul.addr %s334, 8
          %s336 = scalar_lea.vmem [#allocation7], %s335
          %s338 = ssub.s32 128, 128
          %339 = vsyncadd %s333, %s338
          %s340 = smul.addr %s28, 128
          %s341 = scalar_lea.hbm %s2, %s340
          %s343 = sshll.u32 %s336, 4
          %s344 = int_to_ptr.vmem [resolvable:$true] %s343
          %346 = dma.hbm_to_vmem [thread:$0]  %s341, 128, %s344, %s333
        $region44: #{tpu_custom_call.1} parent=31 // pred_fallthru
          _
      $region32: #{tpu_custom_call.1} parent=5 // pred_fallthru
        _
      %p347 = scmp.le.s32.totalorder 1, %s28
      %p348 = scmp.lt.s32.totalorder %s28, 3
      %p349 = pnand %p347, %p348
      %p350 = pneg %p349
      // Predicated region
      $region45: #{tpu_custom_call.1} parent=5 // pred_check
        _
      $region46: #{tpu_custom_call.1} parent=5 // pred_check_branch
        %352 = sbr.rel (%p349) target = $region48
      $region47: #{tpu_custom_call.1} parent=5 // pred_region
        %s353 = ssub.s32 %s28, 1
        %s354 = sand.u32 %s41, 1
        %s355 = scalar_lea.sflag [#allocation3], %s354
        %s356 = sand.u32 %s41, 1
        %s357 = smul.addr %s356, 8
        %s358 = scalar_lea.vmem [#allocation2], %s357
        // Predicated region
        $region49: #{tpu_custom_call.1} parent=47 // pred_check
          %p359 = pneg %p54
        $region50: #{tpu_custom_call.1} parent=47 // pred_check_branch
          %361 = sbr.rel (%p359) target = $region52
        $region51: #{tpu_custom_call.1} parent=47 // pred_region
          %362 = dma.done %s355, 128
        $region52: #{tpu_custom_call.1} parent=47 // pred_fallthru
          _
        %s363 = sand.u32 %s33, 1
        %s364 = scalar_lea.sflag [#allocation6], %s363
        %s365 = sand.u32 %s67, 1
        %s366 = smul.addr %s365, 8
        %s367 = scalar_lea.vmem [#allocation5], %s366
        // Predicated region
        $region53: #{tpu_custom_call.1} parent=47 // pred_check
          %p368 = pneg %p80
        $region54: #{tpu_custom_call.1} parent=47 // pred_check_branch
          %370 = sbr.rel (%p368) target = $region56
        $region55: #{tpu_custom_call.1} parent=47 // pred_region
          %371 = dma.done %s364, 128
        $region56: #{tpu_custom_call.1} parent=47 // pred_fallthru
          _
        %s372 = sand.u32 %s33, 1
        %s373 = scalar_lea.sflag [#allocation6], %s372
        %s374 = sand.u32 %s93, 1
        %s375 = smul.addr %s374, 8
        %s376 = scalar_lea.vmem [#allocation7], %s375
        // Predicated region
        $region57: #{tpu_custom_call.1} parent=47 // pred_check
          %p377 = pneg %p106
        $region58: #{tpu_custom_call.1} parent=47 // pred_check_branch
          %379 = sbr.rel (%p377) target = $region60
        $region59: #{tpu_custom_call.1} parent=47 // pred_region
          %380 = dma.done %s373, 128
        $region60: #{tpu_custom_call.1} parent=47 // pred_fallthru
          _
        // Predicated region
        $region61: #{tpu_custom_call.1} parent=47 // pred_check
          %p381 = pneg %p127
        $region62: #{tpu_custom_call.1} parent=47 // pred_check_branch
          %383 = sbr.rel (%p381) target = $region64
        $region63: #{tpu_custom_call.1} parent=47 // pred_region
          %384 = dma.done [#allocation9], 768
        $region64: #{tpu_custom_call.1} parent=47 // pred_fallthru
          _
        // Predicated region
        $region65: #{tpu_custom_call.1} parent=47 // pred_check
          %p385 = pneg %p148
        $region66: #{tpu_custom_call.1} parent=47 // pred_check_branch
          %387 = sbr.rel (%p385) target = $region68
        $region67: #{tpu_custom_call.1} parent=47 // pred_region
          %388 = dma.done [#allocation9], 48
        $region68: #{tpu_custom_call.1} parent=47 // pred_fallthru
          _
        %s389 = sand.u32 %s41, 1
        %s390 = scalar_lea.sflag [#allocation3], %s389
        %s391 = sand.u32 %s41, 1
        %s392 = smul.addr %s391, 8
        %s393 = scalar_lea.vmem [#allocation2], %s392
        %p394 = pneg %p54
        %p395 = pneg %p51
        %s396 = sand.u32 %s33, 1
        %s397 = scalar_lea.sflag [#allocation6], %s396
        %s398 = sand.u32 %s67, 1
        %s399 = smul.addr %s398, 8
        %s400 = scalar_lea.vmem [#allocation5], %s399
        %p401 = pneg %p80
        %p402 = pneg %p77
        %s403 = sand.u32 %s33, 1
        %s404 = scalar_lea.sflag [#allocation6], %s403
        %s405 = sand.u32 %s93, 1
        %s406 = smul.addr %s405, 8
        %s407 = scalar_lea.vmem [#allocation7], %s406
        %p408 = pneg %p106
        %p409 = pneg %p103
        %p410 = pneg %p127
        %p411 = pneg %p124
        %p412 = pneg %p148
        %p413 = pneg %p145
        %p414 = pneg %p169
        %p415 = pneg %p166
        %p416 = pneg %p190
        %p417 = pneg %p187
        %p418 = pneg %p216
        %p419 = pneg %p213
        %s420 = sand.u32 %s203, 1
        %s421 = scalar_lea.sflag [#allocation4], %s420
        %s422 = sand.u32 %s203, 1
        %s423 = smul.addr %s422, 8
        %s424 = scalar_lea.vmem [#allocation11], %s423
        %p425 = pneg %p242
        %p426 = pneg %p239
        %s427 = sand.u32 %s229, 1
        %s428 = scalar_lea.sflag [#allocation13], %s427
        %s429 = sand.u32 %s229, 1
        %s430 = smul.addr %s429, 32
        %s431 = scalar_lea.vmem [#allocation12], %s430
        %v433 = vld [vmem:[%s358] sm:$0xff]
        %v434 = vpack.c.bf16 %v433, %v433
        %v435 = vld [vmem:[%s367] sm:$0xff]
        %v436 = vpack.c.bf16 %v435, %v435
        %v437 = vld [vmem:[%s376] sm:$0xff]
        %v438 = vpack.c.bf16 %v437, %v437
        %v439 = vld [vmem:[#allocation8] sm:$0xf]
        %v440 = vld [vmem:[#allocation8 + $0x4] sm:$0xf]
        %v441 = vld [vmem:[#allocation8 + $0x8] sm:$0xf]
        %v442 = vld [vmem:[#allocation8 + $0xc] sm:$0xf]
        %v443 = vld [vmem:[#allocation10] sm:$0x1]
        %v445 = vlaneseq
        %v446 = vshrl.u32 %v445, 7
        %v447 = vsub.s32 0, %v446
        %v448 = vrot.slane %v443, %v447
        %v454 = vunpack.c.l.b16 %v439
        %v455 = vunpack.c.l.b16 %v440
        %v456 = vunpack.c.l.b16 %v441
        %v457 = vunpack.c.l.b16 %v442
        %v458 = vpack.c.b16 %v455, %v454
        %v459 = vpack.c.b16 %v457, %v456
        %vm462 = vcmask 261120
        %v464 = vsel %vm462, %v434, 0
        %466 = vmatprep.subr.bf16.mxu0 0
        %467 = vmatpush1.bf16.msra.mxu0 %v458
        %468 = vmatprep.subr.bf16.mxu0 0
        %469 = vmatpush1.bf16.msra.mxu0 %v459
        %470 = vmatprep.subr.bf16.mxu0 0
        %471 = vmatpush1.bf16.msra.mxu0 0
        %472 = vmatprep.subr.bf16.mxu0 0
        %473 = vmatpush1.bf16.msra.mxu0 0
        %474 = vmatprep.subr.bf16.mxu0 0
        %475 = vmatpush1.bf16.msra.mxu0 0
        %476 = vmatprep.subr.bf16.mxu0 0
        %477 = vmatpush1.bf16.msra.mxu0 0
        %478 = vmatprep.subr.bf16.mxu0 0
        %479 = vmatpush1.bf16.msra.mxu0 0
        %480 = vmatprep.subr.bf16.mxu0 0
        %481 = vmatpush1.bf16.msra.mxu0 0
        %482 = vmatprep.subr.bf16.mxu0 0
        %483 = vmatpush1.bf16.msra.mxu0 0
        %484 = vmatprep.subr.bf16.mxu0 0
        %485 = vmatpush1.bf16.msra.mxu0 0
        %486 = vmatprep.subr.bf16.mxu0 0
        %487 = vmatpush1.bf16.msra.mxu0 0
        %488 = vmatprep.subr.bf16.mxu0 0
        %489 = vmatpush1.bf16.msra.mxu0 0
        %490 = vmatprep.subr.bf16.mxu0 0
        %491 = vmatpush1.bf16.msra.mxu0 0
        %492 = vmatprep.subr.bf16.mxu0 0
        %493 = vmatpush1.bf16.msra.mxu0 0
        %494 = vmatprep.subr.bf16.mxu0 0
        %495 = vmatpush1.bf16.msra.mxu0 0
        %496 = vmatprep.subr.bf16.mxu0 0
        %497 = vmatpush1.bf16.msra.mxu0 0
        %498 = vmatprep.mubr.bf16.mxu0 0
        %499 = vmatmul.mubr.bf16.gmra.mrb[0].mxu0 %v464
        %v500 = vpop.f32.mrb[0].mxu0
        %v501 = vadd.f32 %v448, %v500
        %v502 = vpop.f32.mrb[0].mxu0
        %v503 = vpop.f32.mrb[0].mxu0
        %v504 = vpop.f32.mrb[0].mxu0
        %505 = vdwg.mxu0
        %s506 = scalar_lea.vmem [#allocation8], 16
        %v507 = vld [vmem:[%s506] sm:$0xf]
        %v508 = vld [vmem:[%s506 + $0x4] sm:$0xf]
        %v509 = vld [vmem:[%s506 + $0x8] sm:$0xf]
        %v510 = vld [vmem:[%s506 + $0xc] sm:$0xf]
        %s511 = scalar_lea.vmem [#allocation10], 1
        %v512 = vld [vmem:[%s511] sm:$0x1]
        %v514 = vlaneseq
        %v515 = vshrl.u32 %v514, 7
        %v516 = vsub.s32 0, %v515
        %v517 = vrot.slane %v512, %v516
        %v523 = vunpack.c.l.b16 %v507
        %v524 = vunpack.c.l.b16 %v508
        %v525 = vunpack.c.l.b16 %v509
        %v526 = vunpack.c.l.b16 %v510
        %v527 = vpack.c.b16 %v524, %v523
        %v528 = vpack.c.b16 %v526, %v525
        %v532 = vsel %vm462, %v436, 0
        %534 = vmatprep.subr.bf16.mxu0 0
        %535 = vmatpush1.bf16.msra.mxu0 %v527
        %536 = vmatprep.subr.bf16.mxu0 0
        %537 = vmatpush1.bf16.msra.mxu0 %v528
        %538 = vmatprep.subr.bf16.mxu0 0
        %539 = vmatpush1.bf16.msra.mxu0 0
        %540 = vmatprep.subr.bf16.mxu0 0
        %541 = vmatpush1.bf16.msra.mxu0 0
        %542 = vmatprep.subr.bf16.mxu0 0
        %543 = vmatpush1.bf16.msra.mxu0 0
        %544 = vmatprep.subr.bf16.mxu0 0
        %545 = vmatpush1.bf16.msra.mxu0 0
        %546 = vmatprep.subr.bf16.mxu0 0
        %547 = vmatpush1.bf16.msra.mxu0 0
        %548 = vmatprep.subr.bf16.mxu0 0
        %549 = vmatpush1.bf16.msra.mxu0 0
        %550 = vmatprep.subr.bf16.mxu0 0
        %551 = vmatpush1.bf16.msra.mxu0 0
        %552 = vmatprep.subr.bf16.mxu0 0
        %553 = vmatpush1.bf16.msra.mxu0 0
        %554 = vmatprep.subr.bf16.mxu0 0
        %555 = vmatpush1.bf16.msra.mxu0 0
        %556 = vmatprep.subr.bf16.mxu0 0
        %557 = vmatpush1.bf16.msra.mxu0 0
        %558 = vmatprep.subr.bf16.mxu0 0
        %559 = vmatpush1.bf16.msra.mxu0 0
        %560 = vmatprep.subr.bf16.mxu0 0
        %561 = vmatpush1.bf16.msra.mxu0 0
        %562 = vmatprep.subr.bf16.mxu0 0
        %563 = vmatpush1.bf16.msra.mxu0 0
        %564 = vmatprep.subr.bf16.mxu0 0
        %565 = vmatpush1.bf16.msra.mxu0 0
        %566 = vmatprep.mubr.bf16.mxu0 0
        %567 = vmatmul.mubr.bf16.gmra.mrb[0].mxu0 %v532
        %v568 = vpop.f32.mrb[0].mxu0
        %v569 = vadd.f32 %v517, %v568
        %v570 = vpop.f32.mrb[0].mxu0
        %v571 = vpop.f32.mrb[0].mxu0
        %v572 = vpop.f32.mrb[0].mxu0
        %573 = vdwg.mxu0
        %s574 = scalar_lea.vmem [#allocation8], 32
        %v575 = vld [vmem:[%s574] sm:$0xf]
        %v576 = vld [vmem:[%s574 + $0x4] sm:$0xf]
        %v577 = vld [vmem:[%s574 + $0x8] sm:$0xf]
        %v578 = vld [vmem:[%s574 + $0xc] sm:$0xf]
        %s579 = scalar_lea.vmem [#allocation10], 2
        %v580 = vld [vmem:[%s579] sm:$0x1]
        %v582 = vlaneseq
        %v583 = vshrl.u32 %v582, 7
        %v584 = vsub.s32 0, %v583
        %v585 = vrot.slane %v580, %v584
        %v591 = vunpack.c.l.b16 %v575
        %v592 = vunpack.c.l.b16 %v576
        %v593 = vunpack.c.l.b16 %v577
        %v594 = vunpack.c.l.b16 %v578
        %v595 = vpack.c.b16 %v592, %v591
        %v596 = vpack.c.b16 %v594, %v593
        %v600 = vsel %vm462, %v438, 0
        %602 = vmatprep.subr.bf16.mxu0 0
        %603 = vmatpush1.bf16.msra.mxu0 %v595
        %604 = vmatprep.subr.bf16.mxu0 0
        %605 = vmatpush1.bf16.msra.mxu0 %v596
        %606 = vmatprep.subr.bf16.mxu0 0
        %607 = vmatpush1.bf16.msra.mxu0 0
        %608 = vmatprep.subr.bf16.mxu0 0
        %609 = vmatpush1.bf16.msra.mxu0 0
        %610 = vmatprep.subr.bf16.mxu0 0
        %611 = vmatpush1.bf16.msra.mxu0 0
        %612 = vmatprep.subr.bf16.mxu0 0
        %613 = vmatpush1.bf16.msra.mxu0 0
        %614 = vmatprep.subr.bf16.mxu0 0
        %615 = vmatpush1.bf16.msra.mxu0 0
        %616 = vmatprep.subr.bf16.mxu0 0
        %617 = vmatpush1.bf16.msra.mxu0 0
        %618 = vmatprep.subr.bf16.mxu0 0
        %619 = vmatpush1.bf16.msra.mxu0 0
        %620 = vmatprep.subr.bf16.mxu0 0
        %621 = vmatpush1.bf16.msra.mxu0 0
        %622 = vmatprep.subr.bf16.mxu0 0
        %623 = vmatpush1.bf16.msra.mxu0 0
        %624 = vmatprep.subr.bf16.mxu0 0
        %625 = vmatpush1.bf16.msra.mxu0 0
        %626 = vmatprep.subr.bf16.mxu0 0
        %627 = vmatpush1.bf16.msra.mxu0 0
        %628 = vmatprep.subr.bf16.mxu0 0
        %629 = vmatpush1.bf16.msra.mxu0 0
        %630 = vmatprep.subr.bf16.mxu0 0
        %631 = vmatpush1.bf16.msra.mxu0 0
        %632 = vmatprep.subr.bf16.mxu0 0
        %633 = vmatpush1.bf16.msra.mxu0 0
        %634 = vmatprep.mubr.bf16.mxu0 0
        %635 = vmatmul.mubr.bf16.gmra.mrb[0].mxu0 %v600
        %v636 = vpop.f32.mrb[0].mxu0
        %v637 = vadd.f32 %v585, %v636
        %v638 = vpop.f32.mrb[0].mxu0
        %v639 = vpop.f32.mrb[0].mxu0
        %v640 = vpop.f32.mrb[0].mxu0
        %641 = vdwg.mxu0
        %v642 = vpack.c.bf16 %v501, %v501
        %v643 = vpack.c.bf16 %v569, %v569
        %v644 = vpack.c.bf16 %v637, %v637
        %v645 = vld [vmem:[%s6] sm:$0x1]
        %v647 = vlaneseq
        %v648 = vshrl.u32 %v647, 7
        %v649 = vsub.s32 0, %v648
        %v650 = vrot.slane %v645, %v649
        %652 = vst.msk [vmem:[%s424] sm:$0xff] %vm462, %v650
        %vm653 = vcmask 64512
        %v655 = vsel %vm653, %v642, 0
        %v658 = vsel %vm653, %v643, 0
        %660 = vmatprep.subr.bf16.mxu0 0
        %661 = vmatpush1.bf16.xpose.msra.mxu0 %v658
        %662 = vmatprep.subr.bf16.mxu0 0
        %663 = vmatpush1.bf16.xpose.msra.mxu0 0
        %664 = vmatprep.subr.bf16.mxu0 0
        %665 = vmatpush1.bf16.xpose.msra.mxu0 0
        %666 = vmatprep.subr.bf16.mxu0 0
        %667 = vmatpush1.bf16.xpose.msra.mxu0 0
        %668 = vmatprep.subr.bf16.mxu0 0
        %669 = vmatpush1.bf16.xpose.msra.mxu0 0
        %670 = vmatprep.subr.bf16.mxu0 0
        %671 = vmatpush1.bf16.xpose.msra.mxu0 0
        %672 = vmatprep.subr.bf16.mxu0 0
        %673 = vmatpush1.bf16.xpose.msra.mxu0 0
        %674 = vmatprep.subr.bf16.mxu0 0
        %675 = vmatpush1.bf16.xpose.msra.mxu0 0
        %676 = vmatprep.subr.bf16.mxu0 0
        %677 = vmatpush1.bf16.xpose.msra.mxu0 0
        %678 = vmatprep.subr.bf16.mxu0 0
        %679 = vmatpush1.bf16.xpose.msra.mxu0 0
        %680 = vmatprep.subr.bf16.mxu0 0
        %681 = vmatpush1.bf16.xpose.msra.mxu0 0
        %682 = vmatprep.subr.bf16.mxu0 0
        %683 = vmatpush1.bf16.xpose.msra.mxu0 0
        %684 = vmatprep.subr.bf16.mxu0 0
        %685 = vmatpush1.bf16.xpose.msra.mxu0 0
        %686 = vmatprep.subr.bf16.mxu0 0
        %687 = vmatpush1.bf16.xpose.msra.mxu0 0
        %688 = vmatprep.subr.bf16.mxu0 0
        %689 = vmatpush1.bf16.xpose.msra.mxu0 0
        %690 = vmatprep.subr.bf16.mxu0 0
        %691 = vmatpush1.bf16.xpose.msra.mxu0 0
        %692 = vmatprep.mubr.bf16.mxu0 0
        %693 = vmatmul.mubr.bf16.gmra.mrb[0].mxu0 %v655
        %v694 = vpop.f32.mrb[0].mxu0
        %v695 = vadd.f32 0.0, %v694
        %v696 = vpop.f32.mrb[0].mxu0
        %v697 = vpop.f32.mrb[0].mxu0
        %v698 = vpop.f32.mrb[0].mxu0
        %699 = vdwg.mxu0
        %v700 = vsel %vm653, %v695, -inf
        %701 = vmax.xlane.f32.xlu0 %v700
        %v702 = vpop.xlane.xlu0 %701
        %v703 = vsub.f32 %v695, %v702
        %v704 = vmul.f32 %v703, 1.442695
        %v705 = vpow.pop %v704
        %v706 = vsel %vm653, %v705, 0.0
        %707 = vadd.xlane.f32.xlu0 %v706
        %v708 = vpop.xlane.xlu0 %707
        %v709 = vrcp.pop %v708
        %v710 = vmul.f32 %v705, %v709
        %711 = vst.msk [vmem:[%s431] sm:$0xff] %vm653, %v710
        %v712 = vpack.c.bf16 %v710, %v710
        %v714 = vsel %vm653, %v712, 0
        %vm716 = vcmask 1043456
        %v718 = vsel %vm716, %v644, 0
        %720 = vmatprep.subr.bf16.mxu0 0
        %721 = vmatpush1.bf16.msra.mxu0 %v718
        %722 = vmatprep.subr.bf16.mxu0 0
        %723 = vmatpush1.bf16.msra.mxu0 0
        %724 = vmatprep.subr.bf16.mxu0 0
        %725 = vmatpush1.bf16.msra.mxu0 0
        %726 = vmatprep.subr.bf16.mxu0 0
        %727 = vmatpush1.bf16.msra.mxu0 0
        %728 = vmatprep.subr.bf16.mxu0 0
        %729 = vmatpush1.bf16.msra.mxu0 0
        %730 = vmatprep.subr.bf16.mxu0 0
        %731 = vmatpush1.bf16.msra.mxu0 0
        %732 = vmatprep.subr.bf16.mxu0 0
        %733 = vmatpush1.bf16.msra.mxu0 0
        %734 = vmatprep.subr.bf16.mxu0 0
        %735 = vmatpush1.bf16.msra.mxu0 0
        %736 = vmatprep.subr.bf16.mxu0 0
        %737 = vmatpush1.bf16.msra.mxu0 0
        %738 = vmatprep.subr.bf16.mxu0 0
        %739 = vmatpush1.bf16.msra.mxu0 0
        %740 = vmatprep.subr.bf16.mxu0 0
        %741 = vmatpush1.bf16.msra.mxu0 0
        %742 = vmatprep.subr.bf16.mxu0 0
        %743 = vmatpush1.bf16.msra.mxu0 0
        %744 = vmatprep.subr.bf16.mxu0 0
        %745 = vmatpush1.bf16.msra.mxu0 0
        %746 = vmatprep.subr.bf16.mxu0 0
        %747 = vmatpush1.bf16.msra.mxu0 0
        %748 = vmatprep.subr.bf16.mxu0 0
        %749 = vmatpush1.bf16.msra.mxu0 0
        %750 = vmatprep.subr.bf16.mxu0 0
        %751 = vmatpush1.bf16.msra.mxu0 0
        %752 = vmatprep.mubr.bf16.mxu0 0
        %753 = vmatmul.mubr.bf16.gmra.mrb[0].mxu0 %v714
        %v754 = vpop.f32.mrb[0].mxu0
        %v755 = vadd.f32 0.0, %v754
        %v756 = vpop.f32.mrb[0].mxu0
        %v757 = vpop.f32.mrb[0].mxu0
        %v758 = vpop.f32.mrb[0].mxu0
        %759 = vdwg.mxu0
        %v760 = vpack.c.bf16 %v755, %v755
        %v761 = vld [vmem:[%s5] sm:$0xf]
        %v763 = vsel %vm653, %v760, 0
        %v766 = vsel %vm716, %v761, 0
        %768 = vmatprep.subr.bf16.mxu0 0
        %769 = vmatpush1.bf16.msra.mxu0 %v766
        %770 = vmatprep.subr.bf16.mxu0 0
        %771 = vmatpush1.bf16.msra.mxu0 0
        %772 = vmatprep.subr.bf16.mxu0 0
        %773 = vmatpush1.bf16.msra.mxu0 0
        %774 = vmatprep.subr.bf16.mxu0 0
        %775 = vmatpush1.bf16.msra.mxu0 0
        %776 = vmatprep.subr.bf16.mxu0 0
        %777 = vmatpush1.bf16.msra.mxu0 0
        %778 = vmatprep.subr.bf16.mxu0 0
        %779 = vmatpush1.bf16.msra.mxu0 0
        %780 = vmatprep.subr.bf16.mxu0 0
        %781 = vmatpush1.bf16.msra.mxu0 0
        %782 = vmatprep.subr.bf16.mxu0 0
        %783 = vmatpush1.bf16.msra.mxu0 0
        %784 = vmatprep.subr.bf16.mxu0 0
        %785 = vmatpush1.bf16.msra.mxu0 0
        %786 = vmatprep.subr.bf16.mxu0 0
        %787 = vmatpush1.bf16.msra.mxu0 0
        %788 = vmatprep.subr.bf16.mxu0 0
        %789 = vmatpush1.bf16.msra.mxu0 0
        %790 = vmatprep.subr.bf16.mxu0 0
        %791 = vmatpush1.bf16.msra.mxu0 0
        %792 = vmatprep.subr.bf16.mxu0 0
        %793 = vmatpush1.bf16.msra.mxu0 0
        %794 = vmatprep.subr.bf16.mxu0 0
        %795 = vmatpush1.bf16.msra.mxu0 0
        %796 = vmatprep.subr.bf16.mxu0 0
        %797 = vmatpush1.bf16.msra.mxu0 0
        %798 = vmatprep.subr.bf16.mxu0 0
        %799 = vmatpush1.bf16.msra.mxu0 0
        %800 = vmatprep.mubr.bf16.mxu0 0
        %801 = vmatmul.mubr.bf16.gmra.mrb[0].mxu0 %v763
        %v802 = vpop.f32.mrb[0].mxu0
        %v803 = vadd.f32 0.0, %v802
        %v804 = vpop.f32.mrb[0].mxu0
        %v805 = vpop.f32.mrb[0].mxu0
        %v806 = vpop.f32.mrb[0].mxu0
        %807 = vdwg.mxu0
        %v808 = vld [vmem:[%s424] sm:$0xff]
        %v809 = vadd.f32 %v808, %v803
        %810 = vst.msk [vmem:[%s424] sm:$0xff] %vm462, %v809
        %812 = vrot.lane.b32.xlu0 %v642, 120
        %v813 = vpop.permute.xlu0 %812
        %815 = vrot.lane.b32.xlu0 %v643, 120
        %v816 = vpop.permute.xlu0 %815
        %v818 = vsel %vm653, %v813, 0
        %v821 = vsel %vm653, %v816, 0
        %823 = vmatprep.subr.bf16.mxu0 0
        %824 = vmatpush1.bf16.xpose.msra.mxu0 %v821
        %825 = vmatprep.subr.bf16.mxu0 0
        %826 = vmatpush1.bf16.xpose.msra.mxu0 0
        %827 = vmatprep.subr.bf16.mxu0 0
        %828 = vmatpush1.bf16.xpose.msra.mxu0 0
        %829 = vmatprep.subr.bf16.mxu0 0
        %830 = vmatpush1.bf16.xpose.msra.mxu0 0
        %831 = vmatprep.subr.bf16.mxu0 0
        %832 = vmatpush1.bf16.xpose.msra.mxu0 0
        %833 = vmatprep.subr.bf16.mxu0 0
        %834 = vmatpush1.bf16.xpose.msra.mxu0 0
        %835 = vmatprep.subr.bf16.mxu0 0
        %836 = vmatpush1.bf16.xpose.msra.mxu0 0
        %837 = vmatprep.subr.bf16.mxu0 0
        %838 = vmatpush1.bf16.xpose.msra.mxu0 0
        %839 = vmatprep.subr.bf16.mxu0 0
        %840 = vmatpush1.bf16.xpose.msra.mxu0 0
        %841 = vmatprep.subr.bf16.mxu0 0
        %842 = vmatpush1.bf16.xpose.msra.mxu0 0
        %843 = vmatprep.subr.bf16.mxu0 0
        %844 = vmatpush1.bf16.xpose.msra.mxu0 0
        %845 = vmatprep.subr.bf16.mxu0 0
        %846 = vmatpush1.bf16.xpose.msra.mxu0 0
        %847 = vmatprep.subr.bf16.mxu0 0
        %848 = vmatpush1.bf16.xpose.msra.mxu0 0
        %849 = vmatprep.subr.bf16.mxu0 0
        %850 = vmatpush1.bf16.xpose.msra.mxu0 0
        %851 = vmatprep.subr.bf16.mxu0 0
        %852 = vmatpush1.bf16.xpose.msra.mxu0 0
        %853 = vmatprep.subr.bf16.mxu0 0
        %854 = vmatpush1.bf16.xpose.msra.mxu0 0
        %855 = vmatprep.mubr.bf16.mxu0 0
        %856 = vmatmul.mubr.bf16.gmra.mrb[0].mxu0 %v818
        %v857 = vpop.f32.mrb[0].mxu0
        %v858 = vadd.f32 0.0, %v857
        %v859 = vpop.f32.mrb[0].mxu0
        %v860 = vpop.f32.mrb[0].mxu0
        %v861 = vpop.f32.mrb[0].mxu0
        %862 = vdwg.mxu0
        %v863 = vsel %vm653, %v858, -inf
        %864 = vmax.xlane.f32.xlu0 %v863
        %v865 = vpop.xlane.xlu0 %864
        %v866 = vsub.f32 %v858, %v865
        %v867 = vmul.f32 %v866, 1.442695
        %v868 = vpow.pop %v867
        %v869 = vsel %vm653, %v868, 0.0
        %870 = vadd.xlane.f32.xlu0 %v869
        %v871 = vpop.xlane.xlu0 %870
        %v872 = vrcp.pop %v871
        %v873 = vmul.f32 %v868, %v872
        %s874 = scalar_lea.vmem %s431, 8 [#allocation12]
        %875 = vst.msk [vmem:[%s874] sm:$0xff] %vm653, %v873
        %v876 = vpack.c.bf16 %v873, %v873
        %878 = vrot.lane.b32.xlu0 %v644, 120
        %v879 = vpop.permute.xlu0 %878
        %v881 = vsel %vm653, %v876, 0
        %v884 = vsel %vm716, %v879, 0
        %886 = vmatprep.subr.bf16.mxu0 0
        %887 = vmatpush1.bf16.msra.mxu0 %v884
        %888 = vmatprep.subr.bf16.mxu0 0
        %889 = vmatpush1.bf16.msra.mxu0 0
        %890 = vmatprep.subr.bf16.mxu0 0
        %891 = vmatpush1.bf16.msra.mxu0 0
        %892 = vmatprep.subr.bf16.mxu0 0
        %893 = vmatpush1.bf16.msra.mxu0 0
        %894 = vmatprep.subr.bf16.mxu0 0
        %895 = vmatpush1.bf16.msra.mxu0 0
        %896 = vmatprep.subr.bf16.mxu0 0
        %897 = vmatpush1.bf16.msra.mxu0 0
        %898 = vmatprep.subr.bf16.mxu0 0
        %899 = vmatpush1.bf16.msra.mxu0 0
        %900 = vmatprep.subr.bf16.mxu0 0
        %901 = vmatpush1.bf16.msra.mxu0 0
        %902 = vmatprep.subr.bf16.mxu0 0
        %903 = vmatpush1.bf16.msra.mxu0 0
        %904 = vmatprep.subr.bf16.mxu0 0
        %905 = vmatpush1.bf16.msra.mxu0 0
        %906 = vmatprep.subr.bf16.mxu0 0
        %907 = vmatpush1.bf16.msra.mxu0 0
        %908 = vmatprep.subr.bf16.mxu0 0
        %909 = vmatpush1.bf16.msra.mxu0 0
        %910 = vmatprep.subr.bf16.mxu0 0
        %911 = vmatpush1.bf16.msra.mxu0 0
        %912 = vmatprep.subr.bf16.mxu0 0
        %913 = vmatpush1.bf16.msra.mxu0 0
        %914 = vmatprep.subr.bf16.mxu0 0
        %915 = vmatpush1.bf16.msra.mxu0 0
        %916 = vmatprep.subr.bf16.mxu0 0
        %917 = vmatpush1.bf16.msra.mxu0 0
        %918 = vmatprep.mubr.bf16.mxu0 0
        %919 = vmatmul.mubr.bf16.gmra.mrb[0].mxu0 %v881
        %v920 = vpop.f32.mrb[0].mxu0
        %v921 = vadd.f32 0.0, %v920
        %v922 = vpop.f32.mrb[0].mxu0
        %v923 = vpop.f32.mrb[0].mxu0
        %v924 = vpop.f32.mrb[0].mxu0
        %925 = vdwg.mxu0
        %v926 = vpack.c.bf16 %v921, %v921
        %s927 = scalar_lea.vmem %s5, 4
        %v928 = vld [vmem:[%s927] sm:$0xf]
        %v930 = vsel %vm653, %v926, 0
        %v933 = vsel %vm716, %v928, 0
        %935 = vmatprep.subr.bf16.mxu0 0
        %936 = vmatpush1.bf16.msra.mxu0 %v933
        %937 = vmatprep.subr.bf16.mxu0 0
        %938 = vmatpush1.bf16.msra.mxu0 0
        %939 = vmatprep.subr.bf16.mxu0 0
        %940 = vmatpush1.bf16.msra.mxu0 0
        %941 = vmatprep.subr.bf16.mxu0 0
        %942 = vmatpush1.bf16.msra.mxu0 0
        %943 = vmatprep.subr.bf16.mxu0 0
        %944 = vmatpush1.bf16.msra.mxu0 0
        %945 = vmatprep.subr.bf16.mxu0 0
        %946 = vmatpush1.bf16.msra.mxu0 0
        %947 = vmatprep.subr.bf16.mxu0 0
        %948 = vmatpush1.bf16.msra.mxu0 0
        %949 = vmatprep.subr.bf16.mxu0 0
        %950 = vmatpush1.bf16.msra.mxu0 0
        %951 = vmatprep.subr.bf16.mxu0 0
        %952 = vmatpush1.bf16.msra.mxu0 0
        %953 = vmatprep.subr.bf16.mxu0 0
        %954 = vmatpush1.bf16.msra.mxu0 0
        %955 = vmatprep.subr.bf16.mxu0 0
        %956 = vmatpush1.bf16.msra.mxu0 0
        %957 = vmatprep.subr.bf16.mxu0 0
        %958 = vmatpush1.bf16.msra.mxu0 0
        %959 = vmatprep.subr.bf16.mxu0 0
        %960 = vmatpush1.bf16.msra.mxu0 0
        %961 = vmatprep.subr.bf16.mxu0 0
        %962 = vmatpush1.bf16.msra.mxu0 0
        %963 = vmatprep.subr.bf16.mxu0 0
        %964 = vmatpush1.bf16.msra.mxu0 0
        %965 = vmatprep.subr.bf16.mxu0 0
        %966 = vmatpush1.bf16.msra.mxu0 0
        %967 = vmatprep.mubr.bf16.mxu0 0
        %968 = vmatmul.mubr.bf16.gmra.mrb[0].mxu0 %v930
        %v969 = vpop.f32.mrb[0].mxu0
        %v970 = vadd.f32 0.0, %v969
        %v971 = vpop.f32.mrb[0].mxu0
        %v972 = vpop.f32.mrb[0].mxu0
        %v973 = vpop.f32.mrb[0].mxu0
        %974 = vdwg.mxu0
        %v975 = vld [vmem:[%s424] sm:$0xff]
        %v976 = vadd.f32 %v975, %v970
        %977 = vst.msk [vmem:[%s424] sm:$0xff] %vm462, %v976
        %978 = vrot.lane.b32.xlu0 %v642, 112
        %v979 = vpop.permute.xlu0 %978
        %980 = vrot.lane.b32.xlu0 %v643, 112
        %v981 = vpop.permute.xlu0 %980
        %v983 = vsel %vm653, %v979, 0
        %v986 = vsel %vm653, %v981, 0
        %988 = vmatprep.subr.bf16.mxu0 0
        %989 = vmatpush1.bf16.xpose.msra.mxu0 %v986
        %990 = vmatprep.subr.bf16.mxu0 0
        %991 = vmatpush1.bf16.xpose.msra.mxu0 0
        %992 = vmatprep.subr.bf16.mxu0 0
        %993 = vmatpush1.bf16.xpose.msra.mxu0 0
        %994 = vmatprep.subr.bf16.mxu0 0
        %995 = vmatpush1.bf16.xpose.msra.mxu0 0
        %996 = vmatprep.subr.bf16.mxu0 0
        %997 = vmatpush1.bf16.xpose.msra.mxu0 0
        %998 = vmatprep.subr.bf16.mxu0 0
        %999 = vmatpush1.bf16.xpose.msra.mxu0 0
        %1000 = vmatprep.subr.bf16.mxu0 0
        %1001 = vmatpush1.bf16.xpose.msra.mxu0 0
        %1002 = vmatprep.subr.bf16.mxu0 0
        %1003 = vmatpush1.bf16.xpose.msra.mxu0 0
        %1004 = vmatprep.subr.bf16.mxu0 0
        %1005 = vmatpush1.bf16.xpose.msra.mxu0 0
        %1006 = vmatprep.subr.bf16.mxu0 0
        %1007 = vmatpush1.bf16.xpose.msra.mxu0 0
        %1008 = vmatprep.subr.bf16.mxu0 0
        %1009 = vmatpush1.bf16.xpose.msra.mxu0 0
        %1010 = vmatprep.subr.bf16.mxu0 0
        %1011 = vmatpush1.bf16.xpose.msra.mxu0 0
        %1012 = vmatprep.subr.bf16.mxu0 0
        %1013 = vmatpush1.bf16.xpose.msra.mxu0 0
        %1014 = vmatprep.subr.bf16.mxu0 0
        %1015 = vmatpush1.bf16.xpose.msra.mxu0 0
        %1016 = vmatprep.subr.bf16.mxu0 0
        %1017 = vmatpush1.bf16.xpose.msra.mxu0 0
        %1018 = vmatprep.subr.bf16.mxu0 0
        %1019 = vmatpush1.bf16.xpose.msra.mxu0 0
        %1020 = vmatprep.mubr.bf16.mxu0 0
        %1021 = vmatmul.mubr.bf16.gmra.mrb[0].mxu0 %v983
        %v1022 = vpop.f32.mrb[0].mxu0
        %v1023 = vadd.f32 0.0, %v1022
        %v1024 = vpop.f32.mrb[0].mxu0
        %v1025 = vpop.f32.mrb[0].mxu0
        %v1026 = vpop.f32.mrb[0].mxu0
        %1027 = vdwg.mxu0
        %v1028 = vsel %vm653, %v1023, -inf
        %1029 = vmax.xlane.f32.xlu0 %v1028
        %v1030 = vpop.xlane.xlu0 %1029
        %v1031 = vsub.f32 %v1023, %v1030
        %v1032 = vmul.f32 %v1031, 1.442695
        %v1033 = vpow.pop %v1032
        %v1034 = vsel %vm653, %v1033, 0.0
        %1035 = vadd.xlane.f32.xlu0 %v1034
        %v1036 = vpop.xlane.xlu0 %1035
        %v1037 = vrcp.pop %v1036
        %v1038 = vmul.f32 %v1033, %v1037
        %s1039 = scalar_lea.vmem %s431, 16 [#allocation12]
        %1040 = vst.msk [vmem:[%s1039] sm:$0xff] %vm653, %v1038
        %v1041 = vpack.c.bf16 %v1038, %v1038
        %1042 = vrot.lane.b32.xlu0 %v644, 112
        %v1043 = vpop.permute.xlu0 %1042
        %v1045 = vsel %vm653, %v1041, 0
        %v1048 = vsel %vm716, %v1043, 0
        %1050 = vmatprep.subr.bf16.mxu0 0
        %1051 = vmatpush1.bf16.msra.mxu0 %v1048
        %1052 = vmatprep.subr.bf16.mxu0 0
        %1053 = vmatpush1.bf16.msra.mxu0 0
        %1054 = vmatprep.subr.bf16.mxu0 0
        %1055 = vmatpush1.bf16.msra.mxu0 0
        %1056 = vmatprep.subr.bf16.mxu0 0
        %1057 = vmatpush1.bf16.msra.mxu0 0
        %1058 = vmatprep.subr.bf16.mxu0 0
        %1059 = vmatpush1.bf16.msra.mxu0 0
        %1060 = vmatprep.subr.bf16.mxu0 0
        %1061 = vmatpush1.bf16.msra.mxu0 0
        %1062 = vmatprep.subr.bf16.mxu0 0
        %1063 = vmatpush1.bf16.msra.mxu0 0
        %1064 = vmatprep.subr.bf16.mxu0 0
        %1065 = vmatpush1.bf16.msra.mxu0 0
        %1066 = vmatprep.subr.bf16.mxu0 0
        %1067 = vmatpush1.bf16.msra.mxu0 0
        %1068 = vmatprep.subr.bf16.mxu0 0
        %1069 = vmatpush1.bf16.msra.mxu0 0
        %1070 = vmatprep.subr.bf16.mxu0 0
        %1071 = vmatpush1.bf16.msra.mxu0 0
        %1072 = vmatprep.subr.bf16.mxu0 0
        %1073 = vmatpush1.bf16.msra.mxu0 0
        %1074 = vmatprep.subr.bf16.mxu0 0
        %1075 = vmatpush1.bf16.msra.mxu0 0
        %1076 = vmatprep.subr.bf16.mxu0 0
        %1077 = vmatpush1.bf16.msra.mxu0 0
        %1078 = vmatprep.subr.bf16.mxu0 0
        %1079 = vmatpush1.bf16.msra.mxu0 0
        %1080 = vmatprep.subr.bf16.mxu0 0
        %1081 = vmatpush1.bf16.msra.mxu0 0
        %1082 = vmatprep.mubr.bf16.mxu0 0
        %1083 = vmatmul.mubr.bf16.gmra.mrb[0].mxu0 %v1045
        %v1084 = vpop.f32.mrb[0].mxu0
        %v1085 = vadd.f32 0.0, %v1084
        %v1086 = vpop.f32.mrb[0].mxu0
        %v1087 = vpop.f32.mrb[0].mxu0
        %v1088 = vpop.f32.mrb[0].mxu0
        %1089 = vdwg.mxu0
        %v1090 = vpack.c.bf16 %v1085, %v1085
        %s1091 = scalar_lea.vmem %s5, 8
        %v1092 = vld [vmem:[%s1091] sm:$0xf]
        %v1094 = vsel %vm653, %v1090, 0
        %v1097 = vsel %vm716, %v1092, 0
        %1099 = vmatprep.subr.bf16.mxu0 0
        %1100 = vmatpush1.bf16.msra.mxu0 %v1097
        %1101 = vmatprep.subr.bf16.mxu0 0
        %1102 = vmatpush1.bf16.msra.mxu0 0
        %1103 = vmatprep.subr.bf16.mxu0 0
        %1104 = vmatpush1.bf16.msra.mxu0 0
        %1105 = vmatprep.subr.bf16.mxu0 0
        %1106 = vmatpush1.bf16.msra.mxu0 0
        %1107 = vmatprep.subr.bf16.mxu0 0
        %1108 = vmatpush1.bf16.msra.mxu0 0
        %1109 = vmatprep.subr.bf16.mxu0 0
        %1110 = vmatpush1.bf16.msra.mxu0 0
        %1111 = vmatprep.subr.bf16.mxu0 0
        %1112 = vmatpush1.bf16.msra.mxu0 0
        %1113 = vmatprep.subr.bf16.mxu0 0
        %1114 = vmatpush1.bf16.msra.mxu0 0
        %1115 = vmatprep.subr.bf16.mxu0 0
        %1116 = vmatpush1.bf16.msra.mxu0 0
        %1117 = vmatprep.subr.bf16.mxu0 0
        %1118 = vmatpush1.bf16.msra.mxu0 0
        %1119 = vmatprep.subr.bf16.mxu0 0
        %1120 = vmatpush1.bf16.msra.mxu0 0
        %1121 = vmatprep.subr.bf16.mxu0 0
        %1122 = vmatpush1.bf16.msra.mxu0 0
        %1123 = vmatprep.subr.bf16.mxu0 0
        %1124 = vmatpush1.bf16.msra.mxu0 0
        %1125 = vmatprep.subr.bf16.mxu0 0
        %1126 = vmatpush1.bf16.msra.mxu0 0
        %1127 = vmatprep.subr.bf16.mxu0 0
        %1128 = vmatpush1.bf16.msra.mxu0 0
        %1129 = vmatprep.subr.bf16.mxu0 0
        %1130 = vmatpush1.bf16.msra.mxu0 0
        %1131 = vmatprep.mubr.bf16.mxu0 0
        %1132 = vmatmul.mubr.bf16.gmra.mrb[0].mxu0 %v1094
        %v1133 = vpop.f32.mrb[0].mxu0
        %v1134 = vadd.f32 0.0, %v1133
        %v1135 = vpop.f32.mrb[0].mxu0
        %v1136 = vpop.f32.mrb[0].mxu0
        %v1137 = vpop.f32.mrb[0].mxu0
        %1138 = vdwg.mxu0
        %v1139 = vld [vmem:[%s424] sm:$0xff]
        %v1140 = vadd.f32 %v1139, %v1134
        %1141 = vst.msk [vmem:[%s424] sm:$0xff] %vm462, %v1140
        %1142 = vrot.lane.b32.xlu0 %v642, 104
        %v1143 = vpop.permute.xlu0 %1142
        %1144 = vrot.lane.b32.xlu0 %v643, 104
        %v1145 = vpop.permute.xlu0 %1144
        %v1147 = vsel %vm653, %v1143, 0
        %v1150 = vsel %vm653, %v1145, 0
        %1152 = vmatprep.subr.bf16.mxu0 0
        %1153 = vmatpush1.bf16.xpose.msra.mxu0 %v1150
        %1154 = vmatprep.subr.bf16.mxu0 0
        %1155 = vmatpush1.bf16.xpose.msra.mxu0 0
        %1156 = vmatprep.subr.bf16.mxu0 0
        %1157 = vmatpush1.bf16.xpose.msra.mxu0 0
        %1158 = vmatprep.subr.bf16.mxu0 0
        %1159 = vmatpush1.bf16.xpose.msra.mxu0 0
        %1160 = vmatprep.subr.bf16.mxu0 0
        %1161 = vmatpush1.bf16.xpose.msra.mxu0 0
        %1162 = vmatprep.subr.bf16.mxu0 0
        %1163 = vmatpush1.bf16.xpose.msra.mxu0 0
        %1164 = vmatprep.subr.bf16.mxu0 0
        %1165 = vmatpush1.bf16.xpose.msra.mxu0 0
        %1166 = vmatprep.subr.bf16.mxu0 0
        %1167 = vmatpush1.bf16.xpose.msra.mxu0 0
        %1168 = vmatprep.subr.bf16.mxu0 0
        %1169 = vmatpush1.bf16.xpose.msra.mxu0 0
        %1170 = vmatprep.subr.bf16.mxu0 0
        %1171 = vmatpush1.bf16.xpose.msra.mxu0 0
        %1172 = vmatprep.subr.bf16.mxu0 0
        %1173 = vmatpush1.bf16.xpose.msra.mxu0 0
        %1174 = vmatprep.subr.bf16.mxu0 0
        %1175 = vmatpush1.bf16.xpose.msra.mxu0 0
        %1176 = vmatprep.subr.bf16.mxu0 0
        %1177 = vmatpush1.bf16.xpose.msra.mxu0 0
        %1178 = vmatprep.subr.bf16.mxu0 0
        %1179 = vmatpush1.bf16.xpose.msra.mxu0 0
        %1180 = vmatprep.subr.bf16.mxu0 0
        %1181 = vmatpush1.bf16.xpose.msra.mxu0 0
        %1182 = vmatprep.subr.bf16.mxu0 0
        %1183 = vmatpush1.bf16.xpose.msra.mxu0 0
        %1184 = vmatprep.mubr.bf16.mxu0 0
        %1185 = vmatmul.mubr.bf16.gmra.mrb[0].mxu0 %v1147
        %v1186 = vpop.f32.mrb[0].mxu0
        %v1187 = vadd.f32 0.0, %v1186
        %v1188 = vpop.f32.mrb[0].mxu0
        %v1189 = vpop.f32.mrb[0].mxu0
        %v1190 = vpop.f32.mrb[0].mxu0
        %1191 = vdwg.mxu0
        %v1192 = vsel %vm653, %v1187, -inf
        %1193 = vmax.xlane.f32.xlu0 %v1192
        %v1194 = vpop.xlane.xlu0 %1193
        %v1195 = vsub.f32 %v1187, %v1194
        %v1196 = vmul.f32 %v1195, 1.442695
        %v1197 = vpow.pop %v1196
        %v1198 = vsel %vm653, %v1197, 0.0
        %1199 = vadd.xlane.f32.xlu0 %v1198
        %v1200 = vpop.xlane.xlu0 %1199
        %v1201 = vrcp.pop %v1200
        %v1202 = vmul.f32 %v1197, %v1201
        %s1203 = scalar_lea.vmem %s431, 24 [#allocation12]
        %1204 = vst.msk [vmem:[%s1203] sm:$0xff] %vm653, %v1202
        %v1205 = vpack.c.bf16 %v1202, %v1202
        %1206 = vrot.lane.b32.xlu0 %v644, 104
        %v1207 = vpop.permute.xlu0 %1206
        %v1209 = vsel %vm653, %v1205, 0
        %v1212 = vsel %vm716, %v1207, 0
        %1214 = vmatprep.subr.bf16.mxu0 0
        %1215 = vmatpush1.bf16.msra.mxu0 %v1212
        %1216 = vmatprep.subr.bf16.mxu0 0
        %1217 = vmatpush1.bf16.msra.mxu0 0
        %1218 = vmatprep.subr.bf16.mxu0 0
        %1219 = vmatpush1.bf16.msra.mxu0 0
        %1220 = vmatprep.subr.bf16.mxu0 0
        %1221 = vmatpush1.bf16.msra.mxu0 0
        %1222 = vmatprep.subr.bf16.mxu0 0
        %1223 = vmatpush1.bf16.msra.mxu0 0
        %1224 = vmatprep.subr.bf16.mxu0 0
        %1225 = vmatpush1.bf16.msra.mxu0 0
        %1226 = vmatprep.subr.bf16.mxu0 0
        %1227 = vmatpush1.bf16.msra.mxu0 0
        %1228 = vmatprep.subr.bf16.mxu0 0
        %1229 = vmatpush1.bf16.msra.mxu0 0
        %1230 = vmatprep.subr.bf16.mxu0 0
        %1231 = vmatpush1.bf16.msra.mxu0 0
        %1232 = vmatprep.subr.bf16.mxu0 0
        %1233 = vmatpush1.bf16.msra.mxu0 0
        %1234 = vmatprep.subr.bf16.mxu0 0
        %1235 = vmatpush1.bf16.msra.mxu0 0
        %1236 = vmatprep.subr.bf16.mxu0 0
        %1237 = vmatpush1.bf16.msra.mxu0 0
        %1238 = vmatprep.subr.bf16.mxu0 0
        %1239 = vmatpush1.bf16.msra.mxu0 0
        %1240 = vmatprep.subr.bf16.mxu0 0
        %1241 = vmatpush1.bf16.msra.mxu0 0
        %1242 = vmatprep.subr.bf16.mxu0 0
        %1243 = vmatpush1.bf16.msra.mxu0 0
        %1244 = vmatprep.subr.bf16.mxu0 0
        %1245 = vmatpush1.bf16.msra.mxu0 0
        %1246 = vmatprep.mubr.bf16.mxu0 0
        %1247 = vmatmul.mubr.bf16.gmra.mrb[0].mxu0 %v1209
        %v1248 = vpop.f32.mrb[0].mxu0
        %v1249 = vadd.f32 0.0, %v1248
        %v1250 = vpop.f32.mrb[0].mxu0
        %v1251 = vpop.f32.mrb[0].mxu0
        %v1252 = vpop.f32.mrb[0].mxu0
        %1253 = vdwg.mxu0
        %v1254 = vpack.c.bf16 %v1249, %v1249
        %s1255 = scalar_lea.vmem %s5, 12
        %v1256 = vld [vmem:[%s1255] sm:$0xf]
        %v1258 = vsel %vm653, %v1254, 0
        %v1261 = vsel %vm716, %v1256, 0
        %1263 = vmatprep.subr.bf16.mxu0 0
        %1264 = vmatpush1.bf16.msra.mxu0 %v1261
        %1265 = vmatprep.subr.bf16.mxu0 0
        %1266 = vmatpush1.bf16.msra.mxu0 0
        %1267 = vmatprep.subr.bf16.mxu0 0
        %1268 = vmatpush1.bf16.msra.mxu0 0
        %1269 = vmatprep.subr.bf16.mxu0 0
        %1270 = vmatpush1.bf16.msra.mxu0 0
        %1271 = vmatprep.subr.bf16.mxu0 0
        %1272 = vmatpush1.bf16.msra.mxu0 0
        %1273 = vmatprep.subr.bf16.mxu0 0
        %1274 = vmatpush1.bf16.msra.mxu0 0
        %1275 = vmatprep.subr.bf16.mxu0 0
        %1276 = vmatpush1.bf16.msra.mxu0 0
        %1277 = vmatprep.subr.bf16.mxu0 0
        %1278 = vmatpush1.bf16.msra.mxu0 0
        %1279 = vmatprep.subr.bf16.mxu0 0
        %1280 = vmatpush1.bf16.msra.mxu0 0
        %1281 = vmatprep.subr.bf16.mxu0 0
        %1282 = vmatpush1.bf16.msra.mxu0 0
        %1283 = vmatprep.subr.bf16.mxu0 0
        %1284 = vmatpush1.bf16.msra.mxu0 0
        %1285 = vmatprep.subr.bf16.mxu0 0
        %1286 = vmatpush1.bf16.msra.mxu0 0
        %1287 = vmatprep.subr.bf16.mxu0 0
        %1288 = vmatpush1.bf16.msra.mxu0 0
        %1289 = vmatprep.subr.bf16.mxu0 0
        %1290 = vmatpush1.bf16.msra.mxu0 0
        %1291 = vmatprep.subr.bf16.mxu0 0
        %1292 = vmatpush1.bf16.msra.mxu0 0
        %1293 = vmatprep.subr.bf16.mxu0 0
        %1294 = vmatpush1.bf16.msra.mxu0 0
        %1295 = vmatprep.mubr.bf16.mxu0 0
        %1296 = vmatmul.mubr.bf16.gmra.mrb[0].mxu0 %v1258
        %v1297 = vpop.f32.mrb[0].mxu0
        %v1298 = vadd.f32 0.0, %v1297
        %v1299 = vpop.f32.mrb[0].mxu0
        %v1300 = vpop.f32.mrb[0].mxu0
        %v1301 = vpop.f32.mrb[0].mxu0
        %1302 = vdwg.mxu0
        %v1303 = vld [vmem:[%s424] sm:$0xff]
        %v1304 = vadd.f32 %v1303, %v1298
        %1305 = vst.msk [vmem:[%s424] sm:$0xff] %vm462, %v1304
        %s1306 = sand.u32 %s203, 1
        %s1307 = scalar_lea.sflag [#allocation4], %s1306
        %s1308 = sand.u32 %s203, 1
        %s1309 = smul.addr %s1308, 8
        %s1310 = scalar_lea.vmem [#allocation11], %s1309
        %s1311 = sand.u32 %s229, 1
        %s1312 = scalar_lea.sflag [#allocation13], %s1311
        %s1313 = sand.u32 %s229, 1
        %s1314 = smul.addr %s1313, 32
        %s1315 = scalar_lea.vmem [#allocation12], %s1314
        // Predicated region
        $region69: #{tpu_custom_call.1} parent=47 // pred_check
          %p1316 = pneg %p213
        $region70: #{tpu_custom_call.1} parent=47 // pred_check_branch
          %1318 = sbr.rel (%p1316) target = $region72
        $region71: #{tpu_custom_call.1} parent=47 // pred_region
          %s1320 = ssub.s32 128, 128
          %1321 = vsyncadd %s1307, %s1320
          %s1322 = smul.addr %s33, 128
          %s1323 = scalar_lea.hbm %s7, %s1322
          %s1325 = sshll.u32 %s1310, 4
          %s1326 = int_to_ptr.vmem [resolvable:$true] %s1325
          %1328 = dma.vmem_to_hbm [thread:$0]  %s1326, 128, %s1323, %s1307
        $region72: #{tpu_custom_call.1} parent=47 // pred_fallthru
          _
        // Predicated region
        $region73: #{tpu_custom_call.1} parent=47 // pred_check
          %p1329 = pneg %p239
        $region74: #{tpu_custom_call.1} parent=47 // pred_check_branch
          %1331 = sbr.rel (%p1329) target = $region76
        $region75: #{tpu_custom_call.1} parent=47 // pred_region
          %s1333 = ssub.s32 512, 512
          %1334 = vsyncadd %s1312, %s1333
          %s1335 = smul.addr %s33, 4
          %s1336 = smul.addr %s1335, 128
          %s1337 = scalar_lea.hbm %s8, %s1336
          %s1338 = sshll.u32 %s1315, 4
          %s1339 = int_to_ptr.vmem [resolvable:$true] %s1338
          %1344 = dma.vmem_to_hbm [thread:$0]  %s1339, 512, %s1337, %s1312, 128, 128, 8
        $region76: #{tpu_custom_call.1} parent=47 // pred_fallthru
          _
      $region48: #{tpu_custom_call.1} parent=5 // pred_fallthru
        _
      %p1345 = scmp.le.s32.totalorder 2, %s28
      // Predicated region
      $region77: #{tpu_custom_call.1} parent=5 // pred_check
        %p1346 = pneg %p1345
      $region78: #{tpu_custom_call.1} parent=5 // pred_check_branch
        %1348 = sbr.rel (%p1346) target = $region80
      $region79: #{tpu_custom_call.1} parent=5 // pred_region
        %s1349 = ssub.s32 %s28, 2
        // Predicated region
        $region81: #{tpu_custom_call.1} parent=79 // pred_check
          %p1350 = pneg %p219
        $region82: #{tpu_custom_call.1} parent=79 // pred_check_branch
          %1352 = sbr.rel (%p1350) target = $region84
        $region83: #{tpu_custom_call.1} parent=79 // pred_region
          %s1353 = sand.u32 %s204, 1
          %s1354 = scalar_lea.sflag [#allocation4], %s1353
          %s1355 = sand.u32 %s204, 1
          %s1356 = smul.addr %s1355, 8
          %s1357 = scalar_lea.vmem [#allocation11], %s1356
          %1358 = dma.done %s1354, 128
        $region84: #{tpu_custom_call.1} parent=79 // pred_fallthru
          _
        // Predicated region
        $region85: #{tpu_custom_call.1} parent=79 // pred_check
          %p1359 = pneg %p245
        $region86: #{tpu_custom_call.1} parent=79 // pred_check_branch
          %1361 = sbr.rel (%p1359) target = $region88
        $region87: #{tpu_custom_call.1} parent=79 // pred_region
          %s1362 = sand.u32 %s230, 1
          %s1363 = scalar_lea.sflag [#allocation13], %s1362
          %s1364 = sand.u32 %s230, 1
          %s1365 = smul.addr %s1364, 32
          %s1366 = scalar_lea.vmem [#allocation12], %s1365
          %1367 = dma.done %s1363, 512
        $region88: #{tpu_custom_call.1} parent=79 // pred_fallthru
          _
      $region80: #{tpu_custom_call.1} parent=5 // pred_fallthru
        _
    $region6: #{tpu_custom_call.1} parent=1 // loop_footer
      %s32 = sadd.s32 1, %s28
    $region7: #{tpu_custom_call.1} parent=1 // loop_footer_branch
      %27 = sbr.rel target = $region3
    $region8: #{tpu_custom_call.1} parent=1 // loop_exit
      _
    %1368 = vsyncpa [#allocation3], 1
    %s1369 = scalar_lea.sflag [#allocation3], 1
    %1370 = vsyncpa %s1369, 1
    %1371 = vsyncpa [#allocation6], 1
    %s1372 = scalar_lea.sflag [#allocation6], 1
    %1373 = vsyncpa %s1372, 1
    %1374 = vsyncpa [#allocation9], 1
    %1375 = vsyncpa [#allocation4], 1
    %s1376 = scalar_lea.sflag [#allocation4], 1
    %1377 = vsyncpa %s1376, 1
    %1378 = vsyncpa [#allocation13], 1
    %s1379 = scalar_lea.sflag [#allocation13], 1
    %1380 = vsyncpa %s1379, 1

</llo_original>
